<compile_context>
chip_gen: v7x
topology: tpu7x:2x2x1
jax: 0.10.0
libtpu: 0.0.40
codegen_flags: <defaults>
</compile_context>

<pallas_src>
import functools

import jax
import jax.numpy as jnp
from jax import lax
from jax.experimental import pallas as pl
from jax.experimental.pallas import tpu as pltpu


def _mha_kernel(x_ref, wqkv_ref, bqkv_ref, wo_ref, bo_ref, out_ref, *,
                num_heads, head_channels, in_channels, batch_block):
    """One grid step = `batch_block` images, channel-major (C, S) layout.

    x_ref    : (Bt, Cin, S)   f32  tokens, channels on sublanes, S=H*W on lanes
    wqkv_ref : (Npad, Cin)    bf16 fused block-diagonal [Q; K; V] projection,
                              pre-transposed (y^T = W^T x^T); 1/sqrt(Ch) scale
                              folded into the Q rows
    bqkv_ref : (Npad, 1)      f32  fused projection bias (scale folded in Q)
    wo_ref   : (nh, Cin, Ch)  bf16 per-head output-projection panels (W_o^T)
    bo_ref   : (Cin, 1)       f32  output-projection bias
    out_ref  : (Bt, Cin, S)   f32  output, same channel-major layout as input
    """
    Ch, Cin, nh = head_channels, in_channels, num_heads

    # Weights/biases are grid-invariant (constant index_map): load once per step.
    wqkv = wqkv_ref[...]
    bqkv = bqkv_ref[...]
    bo = bo_ref[...]
    wo_heads = [wo_ref[h] for h in range(nh)]            # (Cin, Ch) bf16 each

    def image_body(b, carry):
        # Cast activations to bf16 in-kernel (avoids an extra wrapper HBM pass).
        xb = x_ref[b].astype(jnp.bfloat16)                # (Cin, S)

        # Fused Q/K/V projection for all heads: (Npad, Cin) @ (Cin, S), bf16
        # MXU with f32 accumulation, bias in f32.  Rows [0, Cin) are the
        # (pre-scaled) queries, [Cin, 2Cin) keys, [2Cin, 3Cin) values — all in
        # transposed form (head channels on sublanes, tokens on lanes), so the
        # per-head slices below are cheap sublane slices.
        qkv = jnp.dot(wqkv, xb, preferred_element_type=jnp.float32) + bqkv

        out_acc = None
        for h in range(nh):                               # static head unroll
            qT = qkv[h * Ch:(h + 1) * Ch, :].astype(jnp.bfloat16)            # (Ch, S)
            kT = qkv[Cin + h * Ch:Cin + (h + 1) * Ch, :].astype(jnp.bfloat16)
            vT = qkv[2 * Cin + h * Ch:2 * Cin + (h + 1) * Ch, :].astype(jnp.bfloat16)

            # scores[i, j] = sum_d q[i, d] * k[j, d]   (scale already folded)
            s = lax.dot_general(qT, kT, (((0,), (0,)), ((), ())),
                                preferred_element_type=jnp.float32)          # (S, S)

            # Softmax with deferred normalization: exp / row-sum in f32
            # (v5e-safe); only the small (S, Ch) result is normalized.
            e = jnp.exp(s - jnp.max(s, axis=-1, keepdims=True))              # (S, S)
            denom = jnp.sum(e, axis=-1, keepdims=True)                       # (S, 1)
            # TODO(synk): nn.Dropout(0.1) on the probabilities is identity here
            # (eval-mode semantics); training-mode dropout not implemented.
            u = lax.dot_general(e.astype(jnp.bfloat16), vT,
                                (((1,), (1,)), ((), ())),
                                preferred_element_type=jnp.float32)          # (S, Ch)
            ws = (u * pl.reciprocal(denom, approx=True)).astype(jnp.bfloat16)

            # Per-head output-projection accumulation (no lane-dim concat):
            # out^T (Cin, S) += W_o[h]^T @ ws_h^T, expressed as an NT matmul.
            contrib = lax.dot_general(wo_heads[h], ws, (((1,), (1,)), ((), ())),
                                      preferred_element_type=jnp.float32)    # (Cin, S)
            out_acc = contrib if out_acc is None else out_acc + contrib

        # One lane-dense channel-major store per image.
        out_ref[b] = out_acc + bo
        return carry

    lax.fori_loop(0, batch_block, image_body, 0, unroll=True)


def _vmem_bytes_estimate(bt, S, Cin, n_pad, nh, Ch):
    """Rough per-step VMEM footprint (blocks double-buffered, + live temps)."""
    blk_in = bt * Cin * S * 4
    blk_out = bt * Cin * S * 4
    weights = n_pad * Cin * 2 + n_pad * 4 + nh * Cin * Ch * 2 + Cin * 4
    inter = n_pad * S * 4 + 3 * S * S * 4 + 4 * S * max(Ch, Cin) * 4
    return 2 * (blk_in + blk_out) + 2 * weights + inter


def _pick_batch_block(batch, S, Cin, n_pad, nh, Ch, max_block=8):
    """Largest divisor of `batch` that fits a conservative (v7x-safe) VMEM
    budget AND keeps at least 2 grid steps (2 TensorCores / pipelining)."""
    budget = 24 * 2**20
    best = 1
    for d in range(1, min(batch, max_block) + 1):
        if batch % d != 0:
            continue
        if batch >= 2 and batch // d < 2:
            continue
        if _vmem_bytes_estimate(d, S, Cin, n_pad, nh, Ch) > budget:
            continue
        best = d
    return best


def _pack_params(params, *, num_heads, head_channels, in_channels):
    """Pack per-head Linears into transposed/fused kernel operands."""
    nh, Ch, Cin = num_heads, head_channels, in_channels
    scale = 1.0 / (float(Ch) ** 0.5)
    n_pad = ((3 * Cin + 7) // 8) * 8

    # Fused block-diagonal [Q; K; V] in transposed (out, in) form so the kernel
    # does qkv^T = W @ x^T with a plain NN matmul; scale folded into Q.
    wqkv_t = jnp.zeros((n_pad, Cin), jnp.float32)
    bqkv_t = jnp.zeros((n_pad, 1), jnp.float32)
    for h in range(nh):
        cols = slice(h * Ch, (h + 1) * Ch)                       # input channels
        q_rows = slice(h * Ch, (h + 1) * Ch)
        k_rows = slice(Cin + h * Ch, Cin + (h + 1) * Ch)
        v_rows = slice(2 * Cin + h * Ch, 2 * Cin + (h + 1) * Ch)
        wqkv_t = wqkv_t.at[q_rows, cols].set(params["wq"][h].T * scale)
        wqkv_t = wqkv_t.at[k_rows, cols].set(params["wk"][h].T)
        wqkv_t = wqkv_t.at[v_rows, cols].set(params["wv"][h].T)
        bqkv_t = bqkv_t.at[q_rows, 0].set(params["bq"][h, 0] * scale)
        bqkv_t = bqkv_t.at[k_rows, 0].set(params["bk"][h, 0])
        bqkv_t = bqkv_t.at[v_rows, 0].set(params["bv"][h, 0])

    wo_t = jnp.transpose(params["wo"], (0, 2, 1))                # (nh, Cin, Ch)
    bo_t = params["bo"].reshape(Cin, 1)                          # (Cin, 1)
    return (wqkv_t.astype(jnp.bfloat16), bqkv_t,
            wo_t.astype(jnp.bfloat16), bo_t)


def multihead_attention(x, params, *, num_heads, head_channels):
    """x: (B, C, H, W) float32, NCHW like the PyTorch module."""
    B, Cin, H, W = x.shape
    S = H * W
    Ch = head_channels
    assert Cin == num_heads * Ch

    wqkv_t, bqkv_t, wo_t, bo_t = _pack_params(
        params, num_heads=num_heads, head_channels=Ch, in_channels=Cin)
    n_pad = wqkv_t.shape[0]

    # Free view only: (B, Cin, H, W) -> (B, Cin, S).  No wrapper transposes or
    # dtype casts; the kernel consumes and produces the channel-major layout.
    x_cs = x.reshape(B, Cin, S)

    bt = _pick_batch_block(B, S, Cin, n_pad, num_heads, Ch)
    grid = (B // bt,)

    est = _vmem_bytes_estimate(bt, S, Cin, n_pad, num_heads, Ch)
    vmem_limit = int(min(64 * 2**20, max(32 * 2**20, 2 * est)))

    kernel = functools.partial(_mha_kernel, num_heads=num_heads,
                               head_channels=Ch, in_channels=Cin,
                               batch_block=bt)

    out = pl.pallas_call(
        kernel,
        out_shape=jax.ShapeDtypeStruct((B, Cin, S), jnp.float32),
        grid_spec=pltpu.PrefetchScalarGridSpec(
            num_scalar_prefetch=0,
            grid=grid,
            in_specs=[
                pl.BlockSpec((bt, Cin, S), lambda i: (i, 0, 0)),         # tokens
                pl.BlockSpec((n_pad, Cin), lambda i: (0, 0)),            # W_qkv^T
                pl.BlockSpec((n_pad, 1), lambda i: (0, 0)),              # b_qkv^T
                pl.BlockSpec((num_heads, Cin, Ch), lambda i: (0, 0, 0)),  # W_o^T/head
                pl.BlockSpec((Cin, 1), lambda i: (0, 0)),                # b_o^T
            ],
            out_specs=pl.BlockSpec((bt, Cin, S), lambda i: (i, 0, 0)),
        ),
        compiler_params=pltpu.CompilerParams(
            dimension_semantics=("parallel",),
            vmem_limit_bytes=vmem_limit,
        ),
    )(x_cs, wqkv_t, bqkv_t, wo_t, bo_t)

    # Free view only: (B, Cin, S) -> (B, Cin, H, W).
    return out.reshape(B, Cin, H, W)


def init_params(key, in_channels, num_heads, head_channels):
    """Deterministic init, shapes matching the PyTorch module's Linears."""
    Ch, nh, Cin = head_channels, num_heads, in_channels
    ks = jax.random.split(key, 8)

    def u(k, shape, fan_in):
        bound = 1.0 / (fan_in ** 0.5)
        return jax.random.uniform(k, shape, jnp.float32, -bound, bound)

    # Per-head Linear(Ch, Ch): stored transposed vs torch so that y = x @ W.
    wq = u(ks[0], (nh, Ch, Ch), Ch)
    wk = u(ks[1], (nh, Ch, Ch), Ch)
    wv = u(ks[2], (nh, Ch, Ch), Ch)
    bq = u(ks[3], (nh, 1, Ch), Ch)
    bk = u(ks[4], (nh, 1, Ch), Ch)
    bv = u(ks[5], (nh, 1, Ch), Ch)
    # Output Linear(nh*Ch, Cin): stored transposed (y = x @ W), split per head.
    wo_full = u(ks[6], (nh * Ch, Cin), nh * Ch)
    wo = wo_full.reshape(nh, Ch, Cin)
    bo = u(ks[7], (1, Cin), nh * Ch)
    return dict(wq=wq, bq=bq, wk=wk, bk=bk, wv=wv, bv=bv, wo=wo, bo=bo)


def _reference(x, params, *, num_heads, head_channels):
    """Pure-JAX f32 reference matching the PyTorch forward (eval mode)."""
    B, Cin, H, W = x.shape
    S = H * W
    Ch = head_channels
    xh = x.reshape(B, num_heads, Ch, S).transpose(0, 1, 3, 2)   # (B, nh, S, Ch)
    q = jnp.einsum("bhsc,hcd->bhsd", xh, params["wq"]) + params["bq"][None]
    k = jnp.einsum("bhsc,hcd->bhsd", xh, params["wk"]) + params["bk"][None]
    v = jnp.einsum("bhsc,hcd->bhsd", xh, params["wv"]) + params["bv"][None]
    s = jnp.einsum("bhqc,bhkc->bhqk", q, k) / (Ch ** 0.5)
    p = jax.nn.softmax(s, axis=-1)
    ws = jnp.einsum("bhqk,bhkc->bhqc", p, v)                    # (B, nh, S, Ch)
    out = jnp.einsum("bhsc,hcn->bsn", ws, params["wo"]) + params["bo"][None]
    return out.transpose(0, 2, 1).reshape(B, Cin, H, W)


if __name__ == "__main__":
    # Small shapes consistent with the module: in_channels = num_heads * head_channels.
    B, num_heads, head_channels = 2, 2, 16
    in_channels = num_heads * head_channels      # 32
    H = W = 16                                   # S = 256 (lane-dense stores)

    key = jax.random.PRNGKey(0)
    kx, kp = jax.random.split(key)
    x = jax.random.normal(kx, (B, in_channels, H, W), dtype=jnp.float32)
    params = init_params(kp, in_channels, num_heads, head_channels)

    out = multihead_attention(x, params, num_heads=num_heads,
                              head_channels=head_channels)
    out = jax.block_until_ready(out)

    ref = _reference(x, params, num_heads=num_heads, head_channels=head_channels)
    assert out.shape == (B, in_channels, H, W)
    # bf16 MXU operands + approx softmax reciprocal => looser tolerance than f32.
    err = float(jnp.max(jnp.abs(out - ref)))
    assert err < 5e-2, f"max abs err {err}"

    print("KERNEL_OK")
</pallas_src>

<mosaic_0001>
module attributes {stable_mosaic.version = 11 : i64} {
  func.func @_mha_kernel(%arg0: i32, %arg1: memref<1x32x256xf32, #tpu.memory_space<vmem>>, %arg2: memref<96x32xbf16, #tpu.memory_space<vmem>>, %arg3: memref<96x1xf32, #tpu.memory_space<vmem>>, %arg4: memref<2x32x16xbf16, #tpu.memory_space<vmem>>, %arg5: memref<32x1xf32, #tpu.memory_space<vmem>>, %arg6: memref<1x32x256xf32, #tpu.memory_space<vmem>>) attributes {dimension_semantics = [#tpu.dimension_semantics<parallel>], iteration_bounds = array<i64: 2>, scalar_prefetch = 0 : i64, scratch_operands = 0 : i64, tpu.core_type = #tpu.core_type<tc>, window_params = [{transform_indices = @transform_0, window_bounds = array<i64: 1, 32, 256>}, {pipeline_mode = #tpu.pipeline_mode<synchronous>, transform_indices = @transform_1, window_bounds = array<i64: 96, 32>}, {pipeline_mode = #tpu.pipeline_mode<synchronous>, transform_indices = @transform_2, window_bounds = array<i64: 96, 1>}, {pipeline_mode = #tpu.pipeline_mode<synchronous>, transform_indices = @transform_3, window_bounds = array<i64: 2, 32, 16>}, {pipeline_mode = #tpu.pipeline_mode<synchronous>, transform_indices = @transform_4, window_bounds = array<i64: 32, 1>}, {transform_indices = @transform_5, window_bounds = array<i64: 1, 32, 256>}]} {
    %c0 = arith.constant 0 : index
    %c0_0 = arith.constant 0 : index
    %0 = vector.load %arg2[%c0, %c0_0] : memref<96x32xbf16, #tpu.memory_space<vmem>>, vector<96x32xbf16>
    %c0_1 = arith.constant 0 : index
    %c0_2 = arith.constant 0 : index
    %1 = vector.load %arg3[%c0_1, %c0_2] : memref<96x1xf32, #tpu.memory_space<vmem>>, vector<96x1xf32>
    %c0_3 = arith.constant 0 : index
    %c0_4 = arith.constant 0 : index
    %2 = vector.load %arg5[%c0_3, %c0_4] : memref<32x1xf32, #tpu.memory_space<vmem>>, vector<32x1xf32>
    %c0_5 = arith.constant 0 : index
    %c0_6 = arith.constant 0 : index
    %c0_7 = arith.constant 0 : index
    %3 = vector.load %arg4[%c0_5, %c0_6, %c0_7] : memref<2x32x16xbf16, #tpu.memory_space<vmem>>, vector<1x32x16xbf16>
    %4 = vector.shape_cast %3 : vector<1x32x16xbf16> to vector<32x16xbf16>
    %c1 = arith.constant 1 : index
    %c0_8 = arith.constant 0 : index
    %c0_9 = arith.constant 0 : index
    %5 = vector.load %arg4[%c1, %c0_8, %c0_9] : memref<2x32x16xbf16, #tpu.memory_space<vmem>>, vector<1x32x16xbf16>
    %6 = vector.shape_cast %5 : vector<1x32x16xbf16> to vector<32x16xbf16>
    %c0_i32 = arith.constant 0 : i32
    %7 = arith.index_cast %c0_i32 : i32 to index
    %c0_10 = arith.constant 0 : index
    %c0_11 = arith.constant 0 : index
    %8 = vector.load %arg1[%7, %c0_10, %c0_11] : memref<1x32x256xf32, #tpu.memory_space<vmem>>, vector<1x32x256xf32>
    %9 = vector.shape_cast %8 : vector<1x32x256xf32> to vector<32x256xf32>
    %10 = arith.truncf %9 : vector<32x256xf32> to vector<32x256xbf16>
    %cst = arith.constant dense<0.000000e+00> : vector<96x256xf32>
    %11 = tpu.matmul %0, %10, %cst {dimension_numbers = #tpu.dot_dimension_numbers<[1], [0], [0], [1], [0, 0, 1, 1], [], []>} : vector<96x32xbf16>, vector<32x256xbf16>, vector<96x256xf32> -> vector<96x256xf32>
    %12 = vector.broadcast %1 : vector<96x1xf32> to vector<96x256xf32>
    %13 = arith.addf %11, %12 : vector<96x256xf32>
    %14 = vector.extract_strided_slice %13 {offsets = [0, 0], sizes = [16, 256], strides = [1, 1]} : vector<96x256xf32> to vector<16x256xf32>
    %15 = arith.truncf %14 : vector<16x256xf32> to vector<16x256xbf16>
    %16 = vector.extract_strided_slice %13 {offsets = [32, 0], sizes = [16, 256], strides = [1, 1]} : vector<96x256xf32> to vector<16x256xf32>
    %17 = arith.truncf %16 : vector<16x256xf32> to vector<16x256xbf16>
    %18 = vector.extract_strided_slice %13 {offsets = [64, 0], sizes = [16, 256], strides = [1, 1]} : vector<96x256xf32> to vector<16x256xf32>
    %19 = arith.truncf %18 : vector<16x256xf32> to vector<16x256xbf16>
    %cst_12 = arith.constant dense<0.000000e+00> : vector<256x256xf32>
    %20 = tpu.matmul %15, %17, %cst_12 {dimension_numbers = #tpu.dot_dimension_numbers<[0], [0], [1], [1], [0, 1, 1, 1], [], []>} : vector<16x256xbf16>, vector<16x256xbf16>, vector<256x256xf32> -> vector<256x256xf32>
    %cst_13 = arith.constant dense<0xFF800000> : vector<256xf32>
    %21 = vector.multi_reduction <maximumf>, %20, %cst_13 [1] : vector<256x256xf32> to vector<256xf32>
    %22 = vector.shape_cast %21 : vector<256xf32> to vector<256x1xf32>
    %23 = vector.broadcast %22 : vector<256x1xf32> to vector<256x256xf32>
    %24 = arith.subf %20, %23 : vector<256x256xf32>
    %25 = math.exp %24 : vector<256x256xf32>
    %cst_14 = arith.constant dense<0.000000e+00> : vector<256xf32>
    %26 = vector.multi_reduction <add>, %25, %cst_14 [1] : vector<256x256xf32> to vector<256xf32>
    %27 = vector.shape_cast %26 : vector<256xf32> to vector<256x1xf32>
    %28 = arith.truncf %25 : vector<256x256xf32> to vector<256x256xbf16>
    %cst_15 = arith.constant dense<0.000000e+00> : vector<256x16xf32>
    %29 = tpu.matmul %28, %19, %cst_15 {dimension_numbers = #tpu.dot_dimension_numbers<[1], [1], [0], [0], [0, 0, 1, 0], [], []>} : vector<256x256xbf16>, vector<16x256xbf16>, vector<256x16xf32> -> vector<256x16xf32>
    %30 = tpu.reciprocal %27 {approx = true} : vector<256x1xf32> -> vector<256x1xf32>
    %31 = vector.broadcast %30 : vector<256x1xf32> to vector<256x16xf32>
    %32 = arith.mulf %29, %31 : vector<256x16xf32>
    %33 = arith.truncf %32 : vector<256x16xf32> to vector<256x16xbf16>
    %cst_16 = arith.constant dense<0.000000e+00> : vector<32x256xf32>
    %34 = tpu.matmul %4, %33, %cst_16 {dimension_numbers = #tpu.dot_dimension_numbers<[1], [1], [0], [0], [0, 0, 1, 0], [], []>} : vector<32x16xbf16>, vector<256x16xbf16>, vector<32x256xf32> -> vector<32x256xf32>
    %35 = vector.extract_strided_slice %13 {offsets = [16, 0], sizes = [16, 256], strides = [1, 1]} : vector<96x256xf32> to vector<16x256xf32>
    %36 = arith.truncf %35 : vector<16x256xf32> to vector<16x256xbf16>
    %37 = vector.extract_strided_slice %13 {offsets = [48, 0], sizes = [16, 256], strides = [1, 1]} : vector<96x256xf32> to vector<16x256xf32>
    %38 = arith.truncf %37 : vector<16x256xf32> to vector<16x256xbf16>
    %39 = vector.extract_strided_slice %13 {offsets = [80, 0], sizes = [16, 256], strides = [1, 1]} : vector<96x256xf32> to vector<16x256xf32>
    %40 = arith.truncf %39 : vector<16x256xf32> to vector<16x256xbf16>
    %cst_17 = arith.constant dense<0.000000e+00> : vector<256x256xf32>
    %41 = tpu.matmul %36, %38, %cst_17 {dimension_numbers = #tpu.dot_dimension_numbers<[0], [0], [1], [1], [0, 1, 1, 1], [], []>} : vector<16x256xbf16>, vector<16x256xbf16>, vector<256x256xf32> -> vector<256x256xf32>
    %cst_18 = arith.constant dense<0xFF800000> : vector<256xf32>
    %42 = vector.multi_reduction <maximumf>, %41, %cst_18 [1] : vector<256x256xf32> to vector<256xf32>
    %43 = vector.shape_cast %42 : vector<256xf32> to vector<256x1xf32>
    %44 = vector.broadcast %43 : vector<256x1xf32> to vector<256x256xf32>
    %45 = arith.subf %41, %44 : vector<256x256xf32>
    %46 = math.exp %45 : vector<256x256xf32>
    %cst_19 = arith.constant dense<0.000000e+00> : vector<256xf32>
    %47 = vector.multi_reduction <add>, %46, %cst_19 [1] : vector<256x256xf32> to vector<256xf32>
    %48 = vector.shape_cast %47 : vector<256xf32> to vector<256x1xf32>
    %49 = arith.truncf %46 : vector<256x256xf32> to vector<256x256xbf16>
    %cst_20 = arith.constant dense<0.000000e+00> : vector<256x16xf32>
    %50 = tpu.matmul %49, %40, %cst_20 {dimension_numbers = #tpu.dot_dimension_numbers<[1], [1], [0], [0], [0, 0, 1, 0], [], []>} : vector<256x256xbf16>, vector<16x256xbf16>, vector<256x16xf32> -> vector<256x16xf32>
    %51 = tpu.reciprocal %48 {approx = true} : vector<256x1xf32> -> vector<256x1xf32>
    %52 = vector.broadcast %51 : vector<256x1xf32> to vector<256x16xf32>
    %53 = arith.mulf %50, %52 : vector<256x16xf32>
    %54 = arith.truncf %53 : vector<256x16xf32> to vector<256x16xbf16>
    %cst_21 = arith.constant dense<0.000000e+00> : vector<32x256xf32>
    %55 = tpu.matmul %6, %54, %cst_21 {dimension_numbers = #tpu.dot_dimension_numbers<[1], [1], [0], [0], [0, 0, 1, 0], [], []>} : vector<32x16xbf16>, vector<256x16xbf16>, vector<32x256xf32> -> vector<32x256xf32>
    %56 = arith.addf %34, %55 : vector<32x256xf32>
    %57 = vector.broadcast %2 : vector<32x1xf32> to vector<32x256xf32>
    %58 = arith.addf %56, %57 : vector<32x256xf32>
    %59 = arith.index_cast %c0_i32 : i32 to index
    %c0_22 = arith.constant 0 : index
    %c0_23 = arith.constant 0 : index
    %60 = vector.load %arg6[%59, %c0_22, %c0_23] : memref<1x32x256xf32, #tpu.memory_space<vmem>>, vector<1x32x256xf32>
    %61 = vector.shape_cast %60 : vector<1x32x256xf32> to vector<32x256xf32>
    %62 = vector.shape_cast %58 : vector<32x256xf32> to vector<1x32x256xf32>
    tpu.vector_store %arg6[%59, %c0_22, %c0_23], %62 {strides = array<i32>} : memref<1x32x256xf32, #tpu.memory_space<vmem>>, vector<1x32x256xf32>,
    %c1_i32 = arith.constant 1 : i32
    return
  }
  func.func @transform_0(%arg0: i32) -> (i32, i32, i32) {
    %c0_i32 = arith.constant 0 : i32
    %c0_i32_0 = arith.constant 0 : i32
    %c0_i32_1 = arith.constant 0 : i32
    return %arg0, %c0_i32, %c0_i32_0 : i32, i32, i32
  }
  func.func @transform_1(%arg0: i32) -> (i32, i32) {
    %c0_i32 = arith.constant 0 : i32
    %c0_i32_0 = arith.constant 0 : i32
    %c0_i32_1 = arith.constant 0 : i32
    return %c0_i32, %c0_i32_0 : i32, i32
  }
  func.func @transform_2(%arg0: i32) -> (i32, i32) {
    %c0_i32 = arith.constant 0 : i32
    %c0_i32_0 = arith.constant 0 : i32
    %c0_i32_1 = arith.constant 0 : i32
    return %c0_i32, %c0_i32_0 : i32, i32
  }
  func.func @transform_3(%arg0: i32) -> (i32, i32, i32) {
    %c0_i32 = arith.constant 0 : i32
    %c0_i32_0 = arith.constant 0 : i32
    %c0_i32_1 = arith.constant 0 : i32
    %c0_i32_2 = arith.constant 0 : i32
    return %c0_i32, %c0_i32_0, %c0_i32_1 : i32, i32, i32
  }
  func.func @transform_4(%arg0: i32) -> (i32, i32) {
    %c0_i32 = arith.constant 0 : i32
    %c0_i32_0 = arith.constant 0 : i32
    %c0_i32_1 = arith.constant 0 : i32
    return %c0_i32, %c0_i32_0 : i32, i32
  }
  func.func @transform_5(%arg0: i32) -> (i32, i32, i32) {
    %c0_i32 = arith.constant 0 : i32
    %c0_i32_0 = arith.constant 0 : i32
    %c0_i32_1 = arith.constant 0 : i32
    return %arg0, %c0_i32, %c0_i32_0 : i32, i32, i32
  }
}

</mosaic_0001>

<llo_original>
// kernel: tpu_custom_call.1
$region0: #{tpu_custom_call.1}
  #allocation0 [shape = 'u32[]', space=smem, size = 0x4, offset = 0x4, fixed_abs, tag = 'smem constant byte address 0x4 - core index']
  #allocation1 [shape = 'u32[144,128]{1,0:T(1,128)}', space=vmem, size = 0x12000, scoped, tag = 'internal scratch']
  %s0 = inlined_call_operand.vmem [shape: f32[2,32,256], index: 0, kind: input, shape index: {}]
  %s1 = inlined_call_operand.vmem [shape: bf16[96,32], index: 1, kind: input, shape index: {}]
  %s2 = inlined_call_operand.vmem [shape: f32[96,1], index: 2, kind: input, shape index: {}]
  %s3 = inlined_call_operand.vmem [shape: bf16[2,32,16], index: 3, kind: input, shape index: {}]
  %s4 = inlined_call_operand.vmem [shape: f32[32,1], index: 4, kind: input, shape index: {}]
  %s5 = inlined_call_operand.hbm [shape: f32[2,32,256], index: 5, kind: output, shape index: {}]
  %s6 = sld [smem:[#allocation0]]
  $region53: #{tpu_custom_call.1} parent=0
    _
  %s8 = ssub.s32 1, %s6
  %s9 = scalar_select 0, %s8, %s6
  $region1: #{tpu_custom_call.1} parent=0
    #allocation2 [shape = 'u8[65536]{0}', space=vmem, size = 0x10000, scoped, tag = 'output window, operand 0']
    #allocation3 [shape = 's32[2]{0}', space=sflag, size = 0x8, scoped, tag = 'scoped memory for tpu_custom_call.1']
    %10 = vsyncpa [#allocation3], 0
    %s11 = scalar_lea.sflag [#allocation3], 1
    %12 = vsyncpa %s11, 0
    loop: start=0, step=1, limit=4
    $region2: #{tpu_custom_call.1} parent=1 // loop_pre_header
      _
    $region3: #{tpu_custom_call.1} parent=1 // loop_header
      %s14 = sphi 0, %s18
      %p15 = scmp.ge.s32.totalorder %s14, 4
      %s24 = sphi 0, %s26
      %s27 = sphi 0, %s24
      %s28 = sphi 0, %s27
      %s44 = sphi 0, %s28
      %s48 = sphi 0, %s48
      %s50 = sphi 0, %s48
      %s51 = sphi 0, %s50
      %s65 = sphi 0, %s51
      %s69 = sphi 0, %s69
      %s71 = sphi 0, %s69
      %s72 = sphi 0, %s71
      %s86 = sphi 0, %s72
      %s90 = sphi 0, %s90
      %s92 = sphi 0, %s90
      %s93 = sphi 0, %s92
      %s107 = sphi 0, %s93
      %s111 = sphi 0, %s111
      %s113 = sphi 0, %s111
      %s114 = sphi 0, %s113
      %s128 = sphi 0, %s114
      %s134 = sphi 0, %s136
      %s137 = sphi 0, %s134
      %s138 = sphi 0, %s137
      %s154 = sphi 0, %s138
    $region4: #{tpu_custom_call.1} parent=1 // loop_header_branch
      %17 = sbr.rel (%p15) target = $region8
    $region5: #{tpu_custom_call.1} parent=1 // loop_body
      %s19 = ssub.s32 %s14, 1
      %s20 = ssub.s32 %s14, 2
      %s21 = sadd.s32 %s14, 1
      %s22 = ssub.s32 %s14, %s21
      %p23 = scmp.eq.s32.totalorder %s22, 0
      %s25 = sadd.s32 %s24, 1
      %s26 = scalar_select %p23, %s24, %s25
      %p29 = pneg %p23
      %p30 = scmp.eq.s32.totalorder %s14, 1
      %p31 = por %p29, %p30
      %p32 = scmp.ne.s32.totalorder %s24, %s27
      %p33 = scmp.eq.s32.totalorder %s14, 0
      %p34 = por %p32, %p33
      %p35 = scmp.ne.s32.totalorder %s24, %s27
      %p36 = scmp.eq.s32.totalorder %s19, 1
      %p37 = por %p35, %p36
      %p38 = scmp.ne.s32.totalorder %s27, %s28
      %p39 = scmp.eq.s32.totalorder %s19, 0
      %p40 = por %p38, %p39
      %p41 = scmp.ne.s32.totalorder %s27, %s28
      %p42 = scmp.eq.s32.totalorder %s20, 1
      %p43 = por %p41, %p42
      %p45 = scmp.ne.s32.totalorder %s28, %s44
      %p46 = scmp.eq.s32.totalorder %s20, 0
      %p47 = por %p45, %p46
      %s49 = sadd.s32 %s48, 1
      %p52 = scmp.eq.s32.totalorder %s14, 1
      %p53 = scmp.ne.s32.totalorder %s48, %s50
      %p54 = scmp.eq.s32.totalorder %s14, 0
      %p55 = por %p53, %p54
      %p56 = scmp.ne.s32.totalorder %s48, %s50
      %p57 = scmp.eq.s32.totalorder %s19, 1
      %p58 = por %p56, %p57
      %p59 = scmp.ne.s32.totalorder %s50, %s51
      %p60 = scmp.eq.s32.totalorder %s19, 0
      %p61 = por %p59, %p60
      %p62 = scmp.ne.s32.totalorder %s50, %s51
      %p63 = scmp.eq.s32.totalorder %s20, 1
      %p64 = por %p62, %p63
      %p66 = scmp.ne.s32.totalorder %s51, %s65
      %p67 = scmp.eq.s32.totalorder %s20, 0
      %p68 = por %p66, %p67
      %s70 = sadd.s32 %s69, 1
      %p73 = scmp.eq.s32.totalorder %s14, 1
      %p74 = scmp.ne.s32.totalorder %s69, %s71
      %p75 = scmp.eq.s32.totalorder %s14, 0
      %p76 = por %p74, %p75
      %p77 = scmp.ne.s32.totalorder %s69, %s71
      %p78 = scmp.eq.s32.totalorder %s19, 1
      %p79 = por %p77, %p78
      %p80 = scmp.ne.s32.totalorder %s71, %s72
      %p81 = scmp.eq.s32.totalorder %s19, 0
      %p82 = por %p80, %p81
      %p83 = scmp.ne.s32.totalorder %s71, %s72
      %p84 = scmp.eq.s32.totalorder %s20, 1
      %p85 = por %p83, %p84
      %p87 = scmp.ne.s32.totalorder %s72, %s86
      %p88 = scmp.eq.s32.totalorder %s20, 0
      %p89 = por %p87, %p88
      %s91 = sadd.s32 %s90, 1
      %p94 = scmp.eq.s32.totalorder %s14, 1
      %p95 = scmp.ne.s32.totalorder %s90, %s92
      %p96 = scmp.eq.s32.totalorder %s14, 0
      %p97 = por %p95, %p96
      %p98 = scmp.ne.s32.totalorder %s90, %s92
      %p99 = scmp.eq.s32.totalorder %s19, 1
      %p100 = por %p98, %p99
      %p101 = scmp.ne.s32.totalorder %s92, %s93
      %p102 = scmp.eq.s32.totalorder %s19, 0
      %p103 = por %p101, %p102
      %p104 = scmp.ne.s32.totalorder %s92, %s93
      %p105 = scmp.eq.s32.totalorder %s20, 1
      %p106 = por %p104, %p105
      %p108 = scmp.ne.s32.totalorder %s93, %s107
      %p109 = scmp.eq.s32.totalorder %s20, 0
      %p110 = por %p108, %p109
      %s112 = sadd.s32 %s111, 1
      %p115 = scmp.eq.s32.totalorder %s14, 1
      %p116 = scmp.ne.s32.totalorder %s111, %s113
      %p117 = scmp.eq.s32.totalorder %s14, 0
      %p118 = por %p116, %p117
      %p119 = scmp.ne.s32.totalorder %s111, %s113
      %p120 = scmp.eq.s32.totalorder %s19, 1
      %p121 = por %p119, %p120
      %p122 = scmp.ne.s32.totalorder %s113, %s114
      %p123 = scmp.eq.s32.totalorder %s19, 0
      %p124 = por %p122, %p123
      %p125 = scmp.ne.s32.totalorder %s113, %s114
      %p126 = scmp.eq.s32.totalorder %s20, 1
      %p127 = por %p125, %p126
      %p129 = scmp.ne.s32.totalorder %s114, %s128
      %p130 = scmp.eq.s32.totalorder %s20, 0
      %p131 = por %p129, %p130
      %s132 = ssub.s32 %s14, %s21
      %p133 = scmp.eq.s32.totalorder %s132, 0
      %s135 = sadd.s32 %s134, 1
      %s136 = scalar_select %p133, %s134, %s135
      %p139 = pneg %p133
      %p140 = scmp.eq.s32.totalorder %s14, 1
      %p141 = por %p139, %p140
      %p142 = scmp.ne.s32.totalorder %s134, %s137
      %p143 = scmp.eq.s32.totalorder %s14, 0
      %p144 = por %p142, %p143
      %p145 = scmp.ne.s32.totalorder %s134, %s137
      %p146 = scmp.eq.s32.totalorder %s19, 1
      %p147 = por %p145, %p146
      %p148 = scmp.ne.s32.totalorder %s137, %s138
      %p149 = scmp.eq.s32.totalorder %s19, 0
      %p150 = por %p148, %p149
      %p151 = scmp.ne.s32.totalorder %s137, %s138
      %p152 = scmp.eq.s32.totalorder %s20, 1
      %p153 = por %p151, %p152
      %p155 = scmp.ne.s32.totalorder %s138, %s154
      %p156 = scmp.eq.s32.totalorder %s20, 0
      %p157 = por %p155, %p156
      %p158 = scmp.le.s32.totalorder 1, %s14
      %p159 = scmp.lt.s32.totalorder %s14, 3
      %p160 = pnand %p158, %p159
      %p161 = pneg %p160
      // Predicated region
      $region9: #{tpu_custom_call.1} parent=5 // pred_check
        _
      $region10: #{tpu_custom_call.1} parent=5 // pred_check_branch
        %163 = sbr.rel (%p160) target = $region12
      $region11: #{tpu_custom_call.1} parent=5 // pred_region
        %s164 = ssub.s32 %s14, 1
        // Predicated region
        $region13: #{tpu_custom_call.1} parent=11 // pred_check
          %p165 = pneg %p61
        $region14: #{tpu_custom_call.1} parent=11 // pred_check_branch
          %167 = sbr.rel (%p165) target = $region16
        $region15: #{tpu_custom_call.1} parent=11 // pred_region
          _
        $region16: #{tpu_custom_call.1} parent=11 // pred_fallthru
          _
        // Predicated region
        $region17: #{tpu_custom_call.1} parent=11 // pred_check
          %p168 = pneg %p82
        $region18: #{tpu_custom_call.1} parent=11 // pred_check_branch
          %170 = sbr.rel (%p168) target = $region20
        $region19: #{tpu_custom_call.1} parent=11 // pred_region
          _
        $region20: #{tpu_custom_call.1} parent=11 // pred_fallthru
          _
        // Predicated region
        $region21: #{tpu_custom_call.1} parent=11 // pred_check
          %p171 = pneg %p103
        $region22: #{tpu_custom_call.1} parent=11 // pred_check_branch
          %173 = sbr.rel (%p171) target = $region24
        $region23: #{tpu_custom_call.1} parent=11 // pred_region
          _
        $region24: #{tpu_custom_call.1} parent=11 // pred_fallthru
          _
        // Predicated region
        $region25: #{tpu_custom_call.1} parent=11 // pred_check
          %p174 = pneg %p124
        $region26: #{tpu_custom_call.1} parent=11 // pred_check_branch
          %176 = sbr.rel (%p174) target = $region28
        $region27: #{tpu_custom_call.1} parent=11 // pred_region
          _
        $region28: #{tpu_custom_call.1} parent=11 // pred_fallthru
          _
      $region12: #{tpu_custom_call.1} parent=5 // pred_fallthru
        _
      %p177 = scmp.lt.s32.totalorder %s14, 2
      // Predicated region
      $region29: #{tpu_custom_call.1} parent=5 // pred_check
        %p178 = pneg %p177
      $region30: #{tpu_custom_call.1} parent=5 // pred_check_branch
        %180 = sbr.rel (%p178) target = $region32
      $region31: #{tpu_custom_call.1} parent=5 // pred_region
        // Predicated region
        $region33: #{tpu_custom_call.1} parent=31 // pred_check
          %p181 = pneg %p34
        $region34: #{tpu_custom_call.1} parent=31 // pred_check_branch
          %183 = sbr.rel (%p181) target = $region36
        $region35: #{tpu_custom_call.1} parent=31 // pred_region
          %p184 = scmp.lt.s32.totalorder %s14, 1
          %s185 = scalar_select %p184, %s14, 1
          %s186 = smul.addr %s185, 8
          %s187 = smul.addr %s186, 8
          %s188 = scalar_lea.vmem %s0, %s187
        $region36: #{tpu_custom_call.1} parent=31 // pred_fallthru
          _
      $region32: #{tpu_custom_call.1} parent=5 // pred_fallthru
        _
      %p189 = scmp.le.s32.totalorder 1, %s14
      %p190 = scmp.lt.s32.totalorder %s14, 3
      %p191 = pnand %p189, %p190
      %p192 = pneg %p191
      // Predicated region
      $region37: #{tpu_custom_call.1} parent=5 // pred_check
        _
      $region38: #{tpu_custom_call.1} parent=5 // pred_check_branch
        %194 = sbr.rel (%p191) target = $region40
      $region39: #{tpu_custom_call.1} parent=5 // pred_region
        %s195 = ssub.s32 %s14, 1
        %p196 = scmp.lt.s32.totalorder %s19, 1
        %s197 = scalar_select %p196, %s19, 1
        %s198 = smul.addr %s197, 8
        %s199 = smul.addr %s198, 8
        %s200 = scalar_lea.vmem %s0, %s199
        %p201 = pneg %p40
        %p202 = pneg %p37
        %p203 = pneg %p61
        %p204 = pneg %p58
        %p205 = pneg %p82
        %p206 = pneg %p79
        %p207 = pneg %p103
        %p208 = pneg %p100
        %p209 = pneg %p124
        %p210 = pneg %p121
        %p211 = pneg %p150
        %p212 = pneg %p147
        %s213 = sand.u32 %s137, 1
        %s214 = scalar_lea.sflag [#allocation3], %s213
        %s215 = sand.u32 %s137, 1
        %s216 = smul.addr %s215, 64
        %s217 = scalar_lea.vmem [#allocation2], %s216
        %p218 = scmp.lt.s32.totalorder %s19, 1
        %s219 = scalar_select %p218, %s19, 1
        %s220 = smul.addr %s219, 8
        %s221 = smul.addr %s220, 8
        %s222 = scalar_lea.vmem %s0, %s221
        %v224 = vld [vmem:[%s1] sm:$0xf]
        %v225 = vld [vmem:[%s1 + $0x4] sm:$0xf]
        %v226 = vld [vmem:[%s1 + $0x8] sm:$0xf]
        %v227 = vld [vmem:[%s1 + $0xc] sm:$0xf]
        %v228 = vld [vmem:[%s1 + $0x10] sm:$0xf]
        %v229 = vld [vmem:[%s1 + $0x14] sm:$0xf]
        %v230 = vld [vmem:[%s1 + $0x18] sm:$0xf]
        %v231 = vld [vmem:[%s1 + $0x1c] sm:$0xf]
        %v232 = vld [vmem:[%s1 + $0x20] sm:$0xf]
        %v233 = vld [vmem:[%s1 + $0x24] sm:$0xf]
        %v234 = vld [vmem:[%s1 + $0x28] sm:$0xf]
        %v235 = vld [vmem:[%s1 + $0x2c] sm:$0xf]
        %v236 = vld [vmem:[%s2] sm:$0xff]
        %v237 = vld [vmem:[%s2 + $0x8] sm:$0xff]
        %v238 = vld [vmem:[%s2 + $0x10] sm:$0xff]
        %v239 = vld [vmem:[%s2 + $0x18] sm:$0xff]
        %v240 = vld [vmem:[%s2 + $0x20] sm:$0xff]
        %v241 = vld [vmem:[%s2 + $0x28] sm:$0xff]
        %v242 = vld [vmem:[%s2 + $0x30] sm:$0xff]
        %v243 = vld [vmem:[%s2 + $0x38] sm:$0xff]
        %v244 = vld [vmem:[%s2 + $0x40] sm:$0xff]
        %v245 = vld [vmem:[%s2 + $0x48] sm:$0xff]
        %v246 = vld [vmem:[%s2 + $0x50] sm:$0xff]
        %v247 = vld [vmem:[%s2 + $0x58] sm:$0xff]
        %v248 = vld [vmem:[%s4] sm:$0xff]
        %v249 = vld [vmem:[%s4 + $0x8] sm:$0xff]
        %v250 = vld [vmem:[%s4 + $0x10] sm:$0xff]
        %v251 = vld [vmem:[%s4 + $0x18] sm:$0xff]
        %v252 = vld [vmem:[%s3] sm:$0xf]
        %v253 = vld [vmem:[%s3 + $0x4] sm:$0xf]
        %v254 = vld [vmem:[%s3 + $0x8] sm:$0xf]
        %v255 = vld [vmem:[%s3 + $0xc] sm:$0xf]
        %s256 = scalar_lea.vmem %s3, 16
        %v257 = vld [vmem:[%s256] sm:$0xf]
        %v258 = vld [vmem:[%s256 + $0x4] sm:$0xf]
        %v259 = vld [vmem:[%s256 + $0x8] sm:$0xf]
        %v260 = vld [vmem:[%s256 + $0xc] sm:$0xf]
        %v261 = vld [vmem:[%s222] sm:$0xff]
        %v262 = vld [vmem:[%s222 + $0x8] sm:$0xff]
        %v263 = vld [vmem:[%s222 + $0x10] sm:$0xff]
        %v264 = vld [vmem:[%s222 + $0x18] sm:$0xff]
        %v265 = vld [vmem:[%s222 + $0x20] sm:$0xff]
        %v266 = vld [vmem:[%s222 + $0x28] sm:$0xff]
        %v267 = vld [vmem:[%s222 + $0x30] sm:$0xff]
        %v268 = vld [vmem:[%s222 + $0x38] sm:$0xff]
        %v269 = vpack.c.bf16 %v263, %v261
        %v270 = vpack.c.bf16 %v264, %v262
        %v271 = vpack.c.bf16 %v267, %v265
        %v272 = vpack.c.bf16 %v268, %v266
        %274 = vset.pattern.permute.xlu0 0
        %275 = vperm.xlu0 %274, %v236
        %v276 = vpop.permute.xlu0 %275
        %279 = vset.pattern.permute.xlu0 0
        %280 = vperm.xlu0 %279, %v237
        %v281 = vpop.permute.xlu0 %280
        %284 = vset.pattern.permute.xlu0 0
        %285 = vperm.xlu0 %284, %v238
        %v286 = vpop.permute.xlu0 %285
        %289 = vset.pattern.permute.xlu0 0
        %290 = vperm.xlu0 %289, %v239
        %v291 = vpop.permute.xlu0 %290
        %294 = vset.pattern.permute.xlu0 0
        %295 = vperm.xlu0 %294, %v240
        %v296 = vpop.permute.xlu0 %295
        %299 = vset.pattern.permute.xlu0 0
        %300 = vperm.xlu0 %299, %v241
        %v301 = vpop.permute.xlu0 %300
        %304 = vset.pattern.permute.xlu0 0
        %305 = vperm.xlu0 %304, %v242
        %v306 = vpop.permute.xlu0 %305
        %309 = vset.pattern.permute.xlu0 0
        %310 = vperm.xlu0 %309, %v243
        %v311 = vpop.permute.xlu0 %310
        %314 = vset.pattern.permute.xlu0 0
        %315 = vperm.xlu0 %314, %v244
        %v316 = vpop.permute.xlu0 %315
        %319 = vset.pattern.permute.xlu0 0
        %320 = vperm.xlu0 %319, %v245
        %v321 = vpop.permute.xlu0 %320
        %324 = vset.pattern.permute.xlu0 0
        %325 = vperm.xlu0 %324, %v246
        %v326 = vpop.permute.xlu0 %325
        %329 = vset.pattern.permute.xlu0 0
        %330 = vperm.xlu0 %329, %v247
        %v331 = vpop.permute.xlu0 %330
        %v345 = vunpack.c.l.b16 %v224
        %v346 = vunpack.c.l.b16 %v225
        %v347 = vunpack.c.l.b16 %v226
        %v348 = vunpack.c.l.b16 %v227
        %v349 = vunpack.c.l.b16 %v228
        %v350 = vunpack.c.l.b16 %v229
        %v351 = vunpack.c.l.b16 %v230
        %v352 = vunpack.c.l.b16 %v231
        %v353 = vunpack.c.l.b16 %v232
        %v354 = vunpack.c.l.b16 %v233
        %v355 = vunpack.c.l.b16 %v234
        %v356 = vunpack.c.l.b16 %v235
        %v357 = vpack.c.b16 %v346, %v345
        %v358 = vpack.c.b16 %v348, %v347
        %v359 = vpack.c.b16 %v350, %v349
        %v360 = vpack.c.b16 %v352, %v351
        %v361 = vpack.c.b16 %v354, %v353
        %v362 = vpack.c.b16 %v356, %v355
        %vm363 = vcmask 261120
        %v365 = vsel %vm363, %v357, 0
        %v368 = vsel %vm363, %v358, 0
        %v371 = vsel %vm363, %v359, 0
        %v374 = vsel %vm363, %v360, 0
        %v377 = vsel %vm363, %v361, 0
        %v380 = vsel %vm363, %v362, 0
        %382 = vmatprep.subr.bf16.mxu0 %v270
        %383 = vmatpush1.bf16.msra.mxu0 %v269
        %384 = vmatprep.subr.bf16.mxu0 %v272
        %385 = vmatpush1.bf16.msra.mxu0 %v271
        %386 = vmatprep.subr.bf16.mxu0 0
        %387 = vmatpush1.bf16.msra.mxu0 0
        %388 = vmatprep.subr.bf16.mxu0 0
        %389 = vmatpush1.bf16.msra.mxu0 0
        %390 = vmatprep.subr.bf16.mxu0 0
        %391 = vmatpush1.bf16.msra.mxu0 0
        %392 = vmatprep.subr.bf16.mxu0 0
        %393 = vmatpush1.bf16.msra.mxu0 0
        %394 = vmatprep.subr.bf16.mxu0 0
        %395 = vmatpush1.bf16.msra.mxu0 0
        %396 = vmatprep.subr.bf16.mxu0 0
        %397 = vmatpush1.bf16.msra.mxu0 0
        %398 = vmatprep.subr.bf16.mxu0 0
        %399 = vmatpush1.bf16.msra.mxu0 0
        %400 = vmatprep.subr.bf16.mxu0 0
        %401 = vmatpush1.bf16.msra.mxu0 0
        %402 = vmatprep.subr.bf16.mxu0 0
        %403 = vmatpush1.bf16.msra.mxu0 0
        %404 = vmatprep.subr.bf16.mxu0 0
        %405 = vmatpush1.bf16.msra.mxu0 0
        %406 = vmatprep.subr.bf16.mxu0 0
        %407 = vmatpush1.bf16.msra.mxu0 0
        %408 = vmatprep.subr.bf16.mxu0 0
        %409 = vmatpush1.bf16.msra.mxu0 0
        %410 = vmatprep.subr.bf16.mxu0 0
        %411 = vmatpush1.bf16.msra.mxu0 0
        %412 = vmatprep.subr.bf16.mxu0 0
        %413 = vmatpush1.bf16.msra.mxu0 0
        %414 = vmatprep.mubr.bf16.mxu0 0
        %415 = vmatmul.mubr.bf16.gmra.mrb[0].mxu0 %v365
        %v416 = vpop.f32.mrb[0].mxu0
        %v417 = vadd.f32 %v276, %v416
        %v418 = vpop.f32.mrb[0].mxu0
        %v419 = vadd.f32 %v276, %v418
        %v420 = vpop.f32.mrb[0].mxu0
        %v421 = vadd.f32 %v281, %v420
        %v422 = vpop.f32.mrb[0].mxu0
        %v423 = vadd.f32 %v281, %v422
        %424 = vmatprep.mubr.bf16.mxu0 0
        %425 = vmatmul.mubr.bf16.gmra.mrb[0].mxu0 %v368
        %v426 = vpop.f32.mrb[0].mxu0
        %v427 = vadd.f32 %v286, %v426
        %v428 = vpop.f32.mrb[0].mxu0
        %v429 = vadd.f32 %v286, %v428
        %v430 = vpop.f32.mrb[0].mxu0
        %v431 = vadd.f32 %v291, %v430
        %v432 = vpop.f32.mrb[0].mxu0
        %v433 = vadd.f32 %v291, %v432
        %434 = vmatprep.mubr.bf16.mxu0 0
        %435 = vmatmul.mubr.bf16.gmra.mrb[0].mxu0 %v371
        %v436 = vpop.f32.mrb[0].mxu0
        %v437 = vadd.f32 %v296, %v436
        %v438 = vpop.f32.mrb[0].mxu0
        %v439 = vadd.f32 %v296, %v438
        %v440 = vpop.f32.mrb[0].mxu0
        %v441 = vadd.f32 %v301, %v440
        %v442 = vpop.f32.mrb[0].mxu0
        %v443 = vadd.f32 %v301, %v442
        %444 = vmatprep.mubr.bf16.mxu0 0
        %445 = vmatmul.mubr.bf16.gmra.mrb[0].mxu0 %v374
        %v446 = vpop.f32.mrb[0].mxu0
        %v447 = vadd.f32 %v306, %v446
        %v448 = vpop.f32.mrb[0].mxu0
        %v449 = vadd.f32 %v306, %v448
        %v450 = vpop.f32.mrb[0].mxu0
        %v451 = vadd.f32 %v311, %v450
        %v452 = vpop.f32.mrb[0].mxu0
        %v453 = vadd.f32 %v311, %v452
        %454 = vmatprep.mubr.bf16.mxu0 0
        %455 = vmatmul.mubr.bf16.gmra.mrb[0].mxu0 %v377
        %v456 = vpop.f32.mrb[0].mxu0
        %v457 = vadd.f32 %v316, %v456
        %v458 = vpop.f32.mrb[0].mxu0
        %v459 = vadd.f32 %v316, %v458
        %v460 = vpop.f32.mrb[0].mxu0
        %v461 = vadd.f32 %v321, %v460
        %v462 = vpop.f32.mrb[0].mxu0
        %v463 = vadd.f32 %v321, %v462
        %464 = vmatprep.mubr.bf16.mxu0 0
        %465 = vmatmul.mubr.bf16.gmra.mrb[0].mxu0 %v380
        %v466 = vpop.f32.mrb[0].mxu0
        %v467 = vadd.f32 %v326, %v466
        %v468 = vpop.f32.mrb[0].mxu0
        %v469 = vadd.f32 %v326, %v468
        %v470 = vpop.f32.mrb[0].mxu0
        %v471 = vadd.f32 %v331, %v470
        %v472 = vpop.f32.mrb[0].mxu0
        %v473 = vadd.f32 %v331, %v472
        %474 = vdwg.mxu0
        %v475 = vpack.c.bf16 %v421, %v417
        %v476 = vpack.c.bf16 %v423, %v419
        %v477 = vpack.c.bf16 %v441, %v437
        %v478 = vpack.c.bf16 %v443, %v439
        %v479 = vpack.c.bf16 %v461, %v457
        %v480 = vpack.c.bf16 %v463, %v459
        %481 = vxpose.xlu0.c.b16.start [1/8] %v475, 128
        %482 = vxpose.xlu0.c.b16.cont [2/8] 0, 128
        %483 = vxpose.xlu0.c.b16.cont [3/8] 0, 128
        %484 = vxpose.xlu0.c.b16.cont [4/8] 0, 128
        %485 = vxpose.xlu0.c.b16.cont [5/8] 0, 128
        %486 = vxpose.xlu0.c.b16.cont [6/8] 0, 128
        %487 = vxpose.xlu0.c.b16.cont [7/8] 0, 128
        %488 = vxpose.xlu0.c.b16.end [8/8] 0, 128
        %v489 = vpop.trf.xlu0
        %v490 = vpop.trf.xlu0
        %v491 = vpop.trf.xlu0
        %v492 = vpop.trf.xlu0
        %v493 = vpop.trf.xlu0
        %v494 = vpop.trf.xlu0
        %v495 = vpop.trf.xlu0
        %v496 = vpop.trf.xlu0
        %497 = vxpose.xlu0.c.b16.start [1/8] %v476, 128
        %498 = vxpose.xlu0.c.b16.cont [2/8] 0, 128
        %499 = vxpose.xlu0.c.b16.cont [3/8] 0, 128
        %500 = vxpose.xlu0.c.b16.cont [4/8] 0, 128
        %501 = vxpose.xlu0.c.b16.cont [5/8] 0, 128
        %502 = vxpose.xlu0.c.b16.cont [6/8] 0, 128
        %503 = vxpose.xlu0.c.b16.cont [7/8] 0, 128
        %504 = vxpose.xlu0.c.b16.end [8/8] 0, 128
        %v505 = vpop.trf.xlu0
        %v506 = vpop.trf.xlu0
        %v507 = vpop.trf.xlu0
        %v508 = vpop.trf.xlu0
        %v509 = vpop.trf.xlu0
        %v510 = vpop.trf.xlu0
        %v511 = vpop.trf.xlu0
        %v512 = vpop.trf.xlu0
        %vm513 = vcmask 130048
        %v515 = vsel %vm513, %v489, 0
        %v518 = vsel %vm513, %v490, 0
        %v521 = vsel %vm513, %v491, 0
        %v524 = vsel %vm513, %v492, 0
        %v527 = vsel %vm513, %v493, 0
        %v530 = vsel %vm513, %v494, 0
        %v533 = vsel %vm513, %v495, 0
        %v536 = vsel %vm513, %v496, 0
        %v539 = vsel %vm513, %v505, 0
        %v542 = vsel %vm513, %v506, 0
        %v545 = vsel %vm513, %v507, 0
        %v548 = vsel %vm513, %v508, 0
        %v551 = vsel %vm513, %v509, 0
        %v554 = vsel %vm513, %v510, 0
        %v557 = vsel %vm513, %v511, 0
        %v560 = vsel %vm513, %v512, 0
        %562 = vmatprep.subr.bf16.mxu0 %v478
        %563 = vmatpush1.bf16.msra.mxu0 %v477
        %564 = vmatprep.subr.bf16.mxu0 0
        %565 = vmatpush1.bf16.msra.mxu0 0
        %566 = vmatprep.subr.bf16.mxu0 0
        %567 = vmatpush1.bf16.msra.mxu0 0
        %568 = vmatprep.subr.bf16.mxu0 0
        %569 = vmatpush1.bf16.msra.mxu0 0
        %570 = vmatprep.subr.bf16.mxu0 0
        %571 = vmatpush1.bf16.msra.mxu0 0
        %572 = vmatprep.subr.bf16.mxu0 0
        %573 = vmatpush1.bf16.msra.mxu0 0
        %574 = vmatprep.subr.bf16.mxu0 0
        %575 = vmatpush1.bf16.msra.mxu0 0
        %576 = vmatprep.subr.bf16.mxu0 0
        %577 = vmatpush1.bf16.msra.mxu0 0
        %578 = vmatprep.subr.bf16.mxu0 0
        %579 = vmatpush1.bf16.msra.mxu0 0
        %580 = vmatprep.subr.bf16.mxu0 0
        %581 = vmatpush1.bf16.msra.mxu0 0
        %582 = vmatprep.subr.bf16.mxu0 0
        %583 = vmatpush1.bf16.msra.mxu0 0
        %584 = vmatprep.subr.bf16.mxu0 0
        %585 = vmatpush1.bf16.msra.mxu0 0
        %586 = vmatprep.subr.bf16.mxu0 0
        %587 = vmatpush1.bf16.msra.mxu0 0
        %588 = vmatprep.subr.bf16.mxu0 0
        %589 = vmatpush1.bf16.msra.mxu0 0
        %590 = vmatprep.subr.bf16.mxu0 0
        %591 = vmatpush1.bf16.msra.mxu0 0
        %592 = vmatprep.subr.bf16.mxu0 0
        %593 = vmatpush1.bf16.msra.mxu0 0
        %594 = vmatprep.mubr.bf16.mxu0 0
        %595 = vmatmul.mubr.bf16.gmra.mrb[0].mxu0 %v515
        %v596 = vpop.f32.mrb[0].mxu0
        %v597 = vadd.f32 0.0, %v596
        %v598 = vpop.f32.mrb[0].mxu0
        %v599 = vadd.f32 0.0, %v598
        %v600 = vpop.f32.mrb[0].mxu0
        %v601 = vadd.f32 0.0, %v600
        %v602 = vpop.f32.mrb[0].mxu0
        %v603 = vadd.f32 0.0, %v602
        %604 = vmatprep.mubr.bf16.mxu0 0
        %605 = vmatmul.mubr.bf16.gmra.mrb[0].mxu0 %v518
        %v606 = vpop.f32.mrb[0].mxu0
        %v607 = vadd.f32 0.0, %v606
        %v608 = vpop.f32.mrb[0].mxu0
        %v609 = vadd.f32 0.0, %v608
        %v610 = vpop.f32.mrb[0].mxu0
        %v611 = vadd.f32 0.0, %v610
        %v612 = vpop.f32.mrb[0].mxu0
        %v613 = vadd.f32 0.0, %v612
        %614 = vmatprep.mubr.bf16.mxu0 0
        %615 = vmatmul.mubr.bf16.gmra.mrb[0].mxu0 %v521
        %v616 = vpop.f32.mrb[0].mxu0
        %v617 = vadd.f32 0.0, %v616
        %v618 = vpop.f32.mrb[0].mxu0
        %v619 = vadd.f32 0.0, %v618
        %v620 = vpop.f32.mrb[0].mxu0
        %v621 = vadd.f32 0.0, %v620
        %v622 = vpop.f32.mrb[0].mxu0
        %v623 = vadd.f32 0.0, %v622
        %624 = vmatprep.mubr.bf16.mxu0 0
        %625 = vmatmul.mubr.bf16.gmra.mrb[0].mxu0 %v524
        %v626 = vpop.f32.mrb[0].mxu0
        %v627 = vadd.f32 0.0, %v626
        %v628 = vpop.f32.mrb[0].mxu0
        %v629 = vadd.f32 0.0, %v628
        %v630 = vpop.f32.mrb[0].mxu0
        %v631 = vadd.f32 0.0, %v630
        %v632 = vpop.f32.mrb[0].mxu0
        %v633 = vadd.f32 0.0, %v632
        %634 = vmatprep.mubr.bf16.mxu0 0
        %635 = vmatmul.mubr.bf16.gmra.mrb[0].mxu0 %v527
        %v636 = vpop.f32.mrb[0].mxu0
        %v637 = vadd.f32 0.0, %v636
        %v638 = vpop.f32.mrb[0].mxu0
        %v639 = vadd.f32 0.0, %v638
        %v640 = vpop.f32.mrb[0].mxu0
        %v641 = vadd.f32 0.0, %v640
        %v642 = vpop.f32.mrb[0].mxu0
        %v643 = vadd.f32 0.0, %v642
        %644 = vmatprep.mubr.bf16.mxu0 0
        %645 = vmatmul.mubr.bf16.gmra.mrb[0].mxu0 %v530
        %v646 = vpop.f32.mrb[0].mxu0
        %v647 = vadd.f32 0.0, %v646
        %v648 = vpop.f32.mrb[0].mxu0
        %v649 = vadd.f32 0.0, %v648
        %v650 = vpop.f32.mrb[0].mxu0
        %v651 = vadd.f32 0.0, %v650
        %v652 = vpop.f32.mrb[0].mxu0
        %v653 = vadd.f32 0.0, %v652
        %654 = vmatprep.mubr.bf16.mxu0 0
        %655 = vmatmul.mubr.bf16.gmra.mrb[0].mxu0 %v533
        %v656 = vpop.f32.mrb[0].mxu0
        %v657 = vadd.f32 0.0, %v656
        %v658 = vpop.f32.mrb[0].mxu0
        %v659 = vadd.f32 0.0, %v658
        %v660 = vpop.f32.mrb[0].mxu0
        %v661 = vadd.f32 0.0, %v660
        %v662 = vpop.f32.mrb[0].mxu0
        %v663 = vadd.f32 0.0, %v662
        %664 = vmatprep.mubr.bf16.mxu0 0
        %665 = vmatmul.mubr.bf16.gmra.mrb[0].mxu0 %v536
        %v666 = vpop.f32.mrb[0].mxu0
        %v667 = vadd.f32 0.0, %v666
        %v668 = vpop.f32.mrb[0].mxu0
        %v669 = vadd.f32 0.0, %v668
        %v670 = vpop.f32.mrb[0].mxu0
        %v671 = vadd.f32 0.0, %v670
        %v672 = vpop.f32.mrb[0].mxu0
        %v673 = vadd.f32 0.0, %v672
        %674 = vmatprep.mubr.bf16.mxu0 0
        %675 = vmatmul.mubr.bf16.gmra.mrb[0].mxu0 %v539
        %v676 = vpop.f32.mrb[0].mxu0
        %v677 = vadd.f32 0.0, %v676
        %v678 = vpop.f32.mrb[0].mxu0
        %v679 = vadd.f32 0.0, %v678
        %v680 = vpop.f32.mrb[0].mxu0
        %v681 = vadd.f32 0.0, %v680
        %v682 = vpop.f32.mrb[0].mxu0
        %v683 = vadd.f32 0.0, %v682
        %684 = vmatprep.mubr.bf16.mxu0 0
        %685 = vmatmul.mubr.bf16.gmra.mrb[0].mxu0 %v542
        %v686 = vpop.f32.mrb[0].mxu0
        %v687 = vadd.f32 0.0, %v686
        %v688 = vpop.f32.mrb[0].mxu0
        %v689 = vadd.f32 0.0, %v688
        %v690 = vpop.f32.mrb[0].mxu0
        %v691 = vadd.f32 0.0, %v690
        %v692 = vpop.f32.mrb[0].mxu0
        %v693 = vadd.f32 0.0, %v692
        %694 = vmatprep.mubr.bf16.mxu0 0
        %695 = vmatmul.mubr.bf16.gmra.mrb[0].mxu0 %v545
        %v696 = vpop.f32.mrb[0].mxu0
        %v697 = vadd.f32 0.0, %v696
        %v698 = vpop.f32.mrb[0].mxu0
        %v699 = vadd.f32 0.0, %v698
        %v700 = vpop.f32.mrb[0].mxu0
        %v701 = vadd.f32 0.0, %v700
        %v702 = vpop.f32.mrb[0].mxu0
        %v703 = vadd.f32 0.0, %v702
        %704 = vmatprep.mubr.bf16.mxu0 0
        %705 = vmatmul.mubr.bf16.gmra.mrb[0].mxu0 %v548
        %v706 = vpop.f32.mrb[0].mxu0
        %v707 = vadd.f32 0.0, %v706
        %v708 = vpop.f32.mrb[0].mxu0
        %v709 = vadd.f32 0.0, %v708
        %v710 = vpop.f32.mrb[0].mxu0
        %v711 = vadd.f32 0.0, %v710
        %v712 = vpop.f32.mrb[0].mxu0
        %v713 = vadd.f32 0.0, %v712
        %714 = vmatprep.mubr.bf16.mxu0 0
        %715 = vmatmul.mubr.bf16.gmra.mrb[0].mxu0 %v551
        %v716 = vpop.f32.mrb[0].mxu0
        %v717 = vadd.f32 0.0, %v716
        %v718 = vpop.f32.mrb[0].mxu0
        %v719 = vadd.f32 0.0, %v718
        %v720 = vpop.f32.mrb[0].mxu0
        %v721 = vadd.f32 0.0, %v720
        %v722 = vpop.f32.mrb[0].mxu0
        %v723 = vadd.f32 0.0, %v722
        %724 = vmatprep.mubr.bf16.mxu0 0
        %725 = vmatmul.mubr.bf16.gmra.mrb[0].mxu0 %v554
        %v726 = vpop.f32.mrb[0].mxu0
        %v727 = vadd.f32 0.0, %v726
        %v728 = vpop.f32.mrb[0].mxu0
        %v729 = vadd.f32 0.0, %v728
        %v730 = vpop.f32.mrb[0].mxu0
        %v731 = vadd.f32 0.0, %v730
        %v732 = vpop.f32.mrb[0].mxu0
        %v733 = vadd.f32 0.0, %v732
        %734 = vmatprep.mubr.bf16.mxu0 0
        %735 = vmatmul.mubr.bf16.gmra.mrb[0].mxu0 %v557
        %v736 = vpop.f32.mrb[0].mxu0
        %v737 = vadd.f32 0.0, %v736
        %v738 = vpop.f32.mrb[0].mxu0
        %v739 = vadd.f32 0.0, %v738
        %v740 = vpop.f32.mrb[0].mxu0
        %v741 = vadd.f32 0.0, %v740
        %v742 = vpop.f32.mrb[0].mxu0
        %v743 = vadd.f32 0.0, %v742
        %744 = vmatprep.mubr.bf16.mxu0 0
        %745 = vmatmul.mubr.bf16.gmra.mrb[0].mxu0 %v560
        %v746 = vpop.f32.mrb[0].mxu0
        %v747 = vadd.f32 0.0, %v746
        %v748 = vpop.f32.mrb[0].mxu0
        %v749 = vadd.f32 0.0, %v748
        %v750 = vpop.f32.mrb[0].mxu0
        %v751 = vadd.f32 0.0, %v750
        %v752 = vpop.f32.mrb[0].mxu0
        %v753 = vadd.f32 0.0, %v752
        %754 = vdwg.mxu0
        %v755 = vmax.f32 %v597, %v599
        %756 = vmax.xlane.f32.xlu0 %v755
        %v757 = vpop.xlane.xlu0 %756
        %v758 = vmax.f32 %v601, %v603
        %759 = vmax.xlane.f32.xlu0 %v758
        %v760 = vpop.xlane.xlu0 %759
        %v761 = vmax.f32 %v607, %v609
        %762 = vmax.xlane.f32.xlu0 %v761
        %v763 = vpop.xlane.xlu0 %762
        %v764 = vmax.f32 %v611, %v613
        %765 = vmax.xlane.f32.xlu0 %v764
        %v766 = vpop.xlane.xlu0 %765
        %v767 = vmax.f32 %v617, %v619
        %768 = vmax.xlane.f32.xlu0 %v767
        %v769 = vpop.xlane.xlu0 %768
        %v770 = vmax.f32 %v621, %v623
        %771 = vmax.xlane.f32.xlu0 %v770
        %v772 = vpop.xlane.xlu0 %771
        %v773 = vmax.f32 %v627, %v629
        %774 = vmax.xlane.f32.xlu0 %v773
        %v775 = vpop.xlane.xlu0 %774
        %v776 = vmax.f32 %v631, %v633
        %777 = vmax.xlane.f32.xlu0 %v776
        %v778 = vpop.xlane.xlu0 %777
        %v779 = vmax.f32 %v637, %v639
        %780 = vmax.xlane.f32.xlu0 %v779
        %v781 = vpop.xlane.xlu0 %780
        %v782 = vmax.f32 %v641, %v643
        %783 = vmax.xlane.f32.xlu0 %v782
        %v784 = vpop.xlane.xlu0 %783
        %v785 = vmax.f32 %v647, %v649
        %786 = vmax.xlane.f32.xlu0 %v785
        %v787 = vpop.xlane.xlu0 %786
        %v788 = vmax.f32 %v651, %v653
        %789 = vmax.xlane.f32.xlu0 %v788
        %v790 = vpop.xlane.xlu0 %789
        %v791 = vmax.f32 %v657, %v659
        %792 = vmax.xlane.f32.xlu0 %v791
        %v793 = vpop.xlane.xlu0 %792
        %v794 = vmax.f32 %v661, %v663
        %795 = vmax.xlane.f32.xlu0 %v794
        %v796 = vpop.xlane.xlu0 %795
        %v797 = vmax.f32 %v667, %v669
        %798 = vmax.xlane.f32.xlu0 %v797
        %v799 = vpop.xlane.xlu0 %798
        %v800 = vmax.f32 %v671, %v673
        %801 = vmax.xlane.f32.xlu0 %v800
        %v802 = vpop.xlane.xlu0 %801
        %v803 = vmax.f32 %v677, %v679
        %804 = vmax.xlane.f32.xlu0 %v803
        %v805 = vpop.xlane.xlu0 %804
        %v806 = vmax.f32 %v681, %v683
        %807 = vmax.xlane.f32.xlu0 %v806
        %v808 = vpop.xlane.xlu0 %807
        %v809 = vmax.f32 %v687, %v689
        %810 = vmax.xlane.f32.xlu0 %v809
        %v811 = vpop.xlane.xlu0 %810
        %v812 = vmax.f32 %v691, %v693
        %813 = vmax.xlane.f32.xlu0 %v812
        %v814 = vpop.xlane.xlu0 %813
        %v815 = vmax.f32 %v697, %v699
        %816 = vmax.xlane.f32.xlu0 %v815
        %v817 = vpop.xlane.xlu0 %816
        %v818 = vmax.f32 %v701, %v703
        %819 = vmax.xlane.f32.xlu0 %v818
        %v820 = vpop.xlane.xlu0 %819
        %v821 = vmax.f32 %v707, %v709
        %822 = vmax.xlane.f32.xlu0 %v821
        %v823 = vpop.xlane.xlu0 %822
        %v824 = vmax.f32 %v711, %v713
        %825 = vmax.xlane.f32.xlu0 %v824
        %v826 = vpop.xlane.xlu0 %825
        %v827 = vmax.f32 %v717, %v719
        %828 = vmax.xlane.f32.xlu0 %v827
        %v829 = vpop.xlane.xlu0 %828
        %v830 = vmax.f32 %v721, %v723
        %831 = vmax.xlane.f32.xlu0 %v830
        %v832 = vpop.xlane.xlu0 %831
        %v833 = vmax.f32 %v727, %v729
        %834 = vmax.xlane.f32.xlu0 %v833
        %v835 = vpop.xlane.xlu0 %834
        %v836 = vmax.f32 %v731, %v733
        %837 = vmax.xlane.f32.xlu0 %v836
        %v838 = vpop.xlane.xlu0 %837
        %v839 = vmax.f32 %v737, %v739
        %840 = vmax.xlane.f32.xlu0 %v839
        %v841 = vpop.xlane.xlu0 %840
        %v842 = vmax.f32 %v741, %v743
        %843 = vmax.xlane.f32.xlu0 %v842
        %v844 = vpop.xlane.xlu0 %843
        %v845 = vmax.f32 %v747, %v749
        %846 = vmax.xlane.f32.xlu0 %v845
        %v847 = vpop.xlane.xlu0 %846
        %v848 = vmax.f32 %v751, %v753
        %849 = vmax.xlane.f32.xlu0 %v848
        %v850 = vpop.xlane.xlu0 %849
        %v851 = vsub.f32 %v597, %v757
        %v852 = vsub.f32 %v599, %v757
        %v853 = vsub.f32 %v601, %v760
        %v854 = vsub.f32 %v603, %v760
        %v855 = vsub.f32 %v607, %v763
        %v856 = vsub.f32 %v609, %v763
        %v857 = vsub.f32 %v611, %v766
        %v858 = vsub.f32 %v613, %v766
        %v859 = vsub.f32 %v617, %v769
        %v860 = vsub.f32 %v619, %v769
        %v861 = vsub.f32 %v621, %v772
        %v862 = vsub.f32 %v623, %v772
        %v863 = vsub.f32 %v627, %v775
        %v864 = vsub.f32 %v629, %v775
        %v865 = vsub.f32 %v631, %v778
        %v866 = vsub.f32 %v633, %v778
        %v867 = vsub.f32 %v637, %v781
        %v868 = vsub.f32 %v639, %v781
        %v869 = vsub.f32 %v641, %v784
        %v870 = vsub.f32 %v643, %v784
        %v871 = vsub.f32 %v647, %v787
        %v872 = vsub.f32 %v649, %v787
        %v873 = vsub.f32 %v651, %v790
        %v874 = vsub.f32 %v653, %v790
        %v875 = vsub.f32 %v657, %v793
        %v876 = vsub.f32 %v659, %v793
        %v877 = vsub.f32 %v661, %v796
        %v878 = vsub.f32 %v663, %v796
        %v879 = vsub.f32 %v667, %v799
        %v880 = vsub.f32 %v669, %v799
        %v881 = vsub.f32 %v671, %v802
        %v882 = vsub.f32 %v673, %v802
        %v883 = vsub.f32 %v677, %v805
        %v884 = vsub.f32 %v679, %v805
        %v885 = vsub.f32 %v681, %v808
        %v886 = vsub.f32 %v683, %v808
        %v887 = vsub.f32 %v687, %v811
        %v888 = vsub.f32 %v689, %v811
        %v889 = vsub.f32 %v691, %v814
        %v890 = vsub.f32 %v693, %v814
        %v891 = vsub.f32 %v697, %v817
        %v892 = vsub.f32 %v699, %v817
        %v893 = vsub.f32 %v701, %v820
        %v894 = vsub.f32 %v703, %v820
        %v895 = vsub.f32 %v707, %v823
        %v896 = vsub.f32 %v709, %v823
        %v897 = vsub.f32 %v711, %v826
        %v898 = vsub.f32 %v713, %v826
        %v899 = vsub.f32 %v717, %v829
        %v900 = vsub.f32 %v719, %v829
        %v901 = vsub.f32 %v721, %v832
        %v902 = vsub.f32 %v723, %v832
        %v903 = vsub.f32 %v727, %v835
        %v904 = vsub.f32 %v729, %v835
        %v905 = vsub.f32 %v731, %v838
        %v906 = vsub.f32 %v733, %v838
        %v907 = vsub.f32 %v737, %v841
        %v908 = vsub.f32 %v739, %v841
        %v909 = vsub.f32 %v741, %v844
        %v910 = vsub.f32 %v743, %v844
        %v911 = vsub.f32 %v747, %v847
        %v912 = vsub.f32 %v749, %v847
        %v913 = vsub.f32 %v751, %v850
        %v914 = vsub.f32 %v753, %v850
        %v915 = vmul.f32 %v851, 1.442695
        %v916 = vpow.pop %v915
        %v917 = vmul.f32 %v852, 1.442695
        %v918 = vpow.pop %v917
        %v919 = vmul.f32 %v853, 1.442695
        %v920 = vpow.pop %v919
        %v921 = vmul.f32 %v854, 1.442695
        %v922 = vpow.pop %v921
        %v923 = vmul.f32 %v855, 1.442695
        %v924 = vpow.pop %v923
        %v925 = vmul.f32 %v856, 1.442695
        %v926 = vpow.pop %v925
        %v927 = vmul.f32 %v857, 1.442695
        %v928 = vpow.pop %v927
        %v929 = vmul.f32 %v858, 1.442695
        %v930 = vpow.pop %v929
        %v931 = vmul.f32 %v859, 1.442695
        %v932 = vpow.pop %v931
        %v933 = vmul.f32 %v860, 1.442695
        %v934 = vpow.pop %v933
        %v935 = vmul.f32 %v861, 1.442695
        %v936 = vpow.pop %v935
        %v937 = vmul.f32 %v862, 1.442695
        %v938 = vpow.pop %v937
        %v939 = vmul.f32 %v863, 1.442695
        %v940 = vpow.pop %v939
        %v941 = vmul.f32 %v864, 1.442695
        %v942 = vpow.pop %v941
        %v943 = vmul.f32 %v865, 1.442695
        %v944 = vpow.pop %v943
        %v945 = vmul.f32 %v866, 1.442695
        %v946 = vpow.pop %v945
        %v947 = vmul.f32 %v867, 1.442695
        %v948 = vpow.pop %v947
        %v949 = vmul.f32 %v868, 1.442695
        %v950 = vpow.pop %v949
        %v951 = vmul.f32 %v869, 1.442695
        %v952 = vpow.pop %v951
        %v953 = vmul.f32 %v870, 1.442695
        %v954 = vpow.pop %v953
        %v955 = vmul.f32 %v871, 1.442695
        %v956 = vpow.pop %v955
        %v957 = vmul.f32 %v872, 1.442695
        %v958 = vpow.pop %v957
        %v959 = vmul.f32 %v873, 1.442695
        %v960 = vpow.pop %v959
        %v961 = vmul.f32 %v874, 1.442695
        %v962 = vpow.pop %v961
        %v963 = vmul.f32 %v875, 1.442695
        %v964 = vpow.pop %v963
        %v965 = vmul.f32 %v876, 1.442695
        %v966 = vpow.pop %v965
        %v967 = vmul.f32 %v877, 1.442695
        %v968 = vpow.pop %v967
        %v969 = vmul.f32 %v878, 1.442695
        %v970 = vpow.pop %v969
        %v971 = vmul.f32 %v879, 1.442695
        %v972 = vpow.pop %v971
        %v973 = vmul.f32 %v880, 1.442695
        %v974 = vpow.pop %v973
        %v975 = vmul.f32 %v881, 1.442695
        %v976 = vpow.pop %v975
        %v977 = vmul.f32 %v882, 1.442695
        %v978 = vpow.pop %v977
        %v979 = vmul.f32 %v883, 1.442695
        %v980 = vpow.pop %v979
        %v981 = vmul.f32 %v884, 1.442695
        %v982 = vpow.pop %v981
        %v983 = vmul.f32 %v885, 1.442695
        %v984 = vpow.pop %v983
        %v985 = vmul.f32 %v886, 1.442695
        %v986 = vpow.pop %v985
        %v987 = vmul.f32 %v887, 1.442695
        %v988 = vpow.pop %v987
        %v989 = vmul.f32 %v888, 1.442695
        %v990 = vpow.pop %v989
        %v991 = vmul.f32 %v889, 1.442695
        %v992 = vpow.pop %v991
        %v993 = vmul.f32 %v890, 1.442695
        %v994 = vpow.pop %v993
        %v995 = vmul.f32 %v891, 1.442695
        %v996 = vpow.pop %v995
        %v997 = vmul.f32 %v892, 1.442695
        %v998 = vpow.pop %v997
        %v999 = vmul.f32 %v893, 1.442695
        %v1000 = vpow.pop %v999
        %v1001 = vmul.f32 %v894, 1.442695
        %v1002 = vpow.pop %v1001
        %v1003 = vmul.f32 %v895, 1.442695
        %v1004 = vpow.pop %v1003
        %v1005 = vmul.f32 %v896, 1.442695
        %v1006 = vpow.pop %v1005
        %v1007 = vmul.f32 %v897, 1.442695
        %v1008 = vpow.pop %v1007
        %v1009 = vmul.f32 %v898, 1.442695
        %v1010 = vpow.pop %v1009
        %v1011 = vmul.f32 %v899, 1.442695
        %v1012 = vpow.pop %v1011
        %v1013 = vmul.f32 %v900, 1.442695
        %v1014 = vpow.pop %v1013
        %v1015 = vmul.f32 %v901, 1.442695
        %v1016 = vpow.pop %v1015
        %v1017 = vmul.f32 %v902, 1.442695
        %v1018 = vpow.pop %v1017
        %v1019 = vmul.f32 %v903, 1.442695
        %v1020 = vpow.pop %v1019
        %v1021 = vmul.f32 %v904, 1.442695
        %v1022 = vpow.pop %v1021
        %v1023 = vmul.f32 %v905, 1.442695
        %v1024 = vpow.pop %v1023
        %v1025 = vmul.f32 %v906, 1.442695
        %v1026 = vpow.pop %v1025
        %v1027 = vmul.f32 %v907, 1.442695
        %v1028 = vpow.pop %v1027
        %v1029 = vmul.f32 %v908, 1.442695
        %v1030 = vpow.pop %v1029
        %v1031 = vmul.f32 %v909, 1.442695
        %v1032 = vpow.pop %v1031
        %v1033 = vmul.f32 %v910, 1.442695
        %v1034 = vpow.pop %v1033
        %v1035 = vmul.f32 %v911, 1.442695
        %v1036 = vpow.pop %v1035
        %v1037 = vmul.f32 %v912, 1.442695
        %v1038 = vpow.pop %v1037
        %v1039 = vmul.f32 %v913, 1.442695
        %v1040 = vpow.pop %v1039
        %v1041 = vmul.f32 %v914, 1.442695
        %v1042 = vpow.pop %v1041
        %v1043 = vadd.f32 %v916, %v918
        %1044 = vadd.xlane.f32.xlu0 %v1043
        %v1045 = vpop.xlane.xlu0 %1044
        %v1046 = vadd.f32 %v920, %v922
        %1047 = vadd.xlane.f32.xlu0 %v1046
        %v1048 = vpop.xlane.xlu0 %1047
        %v1049 = vadd.f32 %v924, %v926
        %1050 = vadd.xlane.f32.xlu0 %v1049
        %v1051 = vpop.xlane.xlu0 %1050
        %v1052 = vadd.f32 %v928, %v930
        %1053 = vadd.xlane.f32.xlu0 %v1052
        %v1054 = vpop.xlane.xlu0 %1053
        %v1055 = vadd.f32 %v932, %v934
        %1056 = vadd.xlane.f32.xlu0 %v1055
        %v1057 = vpop.xlane.xlu0 %1056
        %v1058 = vadd.f32 %v936, %v938
        %1059 = vadd.xlane.f32.xlu0 %v1058
        %v1060 = vpop.xlane.xlu0 %1059
        %v1061 = vadd.f32 %v940, %v942
        %1062 = vadd.xlane.f32.xlu0 %v1061
        %v1063 = vpop.xlane.xlu0 %1062
        %v1064 = vadd.f32 %v944, %v946
        %1065 = vadd.xlane.f32.xlu0 %v1064
        %v1066 = vpop.xlane.xlu0 %1065
        %v1067 = vadd.f32 %v948, %v950
        %1068 = vadd.xlane.f32.xlu0 %v1067
        %v1069 = vpop.xlane.xlu0 %1068
        %v1070 = vadd.f32 %v952, %v954
        %1071 = vadd.xlane.f32.xlu0 %v1070
        %v1072 = vpop.xlane.xlu0 %1071
        %v1073 = vadd.f32 %v956, %v958
        %1074 = vadd.xlane.f32.xlu0 %v1073
        %v1075 = vpop.xlane.xlu0 %1074
        %v1076 = vadd.f32 %v960, %v962
        %1077 = vadd.xlane.f32.xlu0 %v1076
        %v1078 = vpop.xlane.xlu0 %1077
        %v1079 = vadd.f32 %v964, %v966
        %1080 = vadd.xlane.f32.xlu0 %v1079
        %v1081 = vpop.xlane.xlu0 %1080
        %v1082 = vadd.f32 %v968, %v970
        %1083 = vadd.xlane.f32.xlu0 %v1082
        %v1084 = vpop.xlane.xlu0 %1083
        %v1085 = vadd.f32 %v972, %v974
        %1086 = vadd.xlane.f32.xlu0 %v1085
        %v1087 = vpop.xlane.xlu0 %1086
        %v1088 = vadd.f32 %v976, %v978
        %1089 = vadd.xlane.f32.xlu0 %v1088
        %v1090 = vpop.xlane.xlu0 %1089
        %v1091 = vadd.f32 %v980, %v982
        %1092 = vadd.xlane.f32.xlu0 %v1091
        %v1093 = vpop.xlane.xlu0 %1092
        %v1094 = vadd.f32 %v984, %v986
        %1095 = vadd.xlane.f32.xlu0 %v1094
        %v1096 = vpop.xlane.xlu0 %1095
        %v1097 = vadd.f32 %v988, %v990
        %1098 = vadd.xlane.f32.xlu0 %v1097
        %v1099 = vpop.xlane.xlu0 %1098
        %v1100 = vadd.f32 %v992, %v994
        %1101 = vadd.xlane.f32.xlu0 %v1100
        %v1102 = vpop.xlane.xlu0 %1101
        %v1103 = vadd.f32 %v996, %v998
        %1104 = vadd.xlane.f32.xlu0 %v1103
        %v1105 = vpop.xlane.xlu0 %1104
        %v1106 = vadd.f32 %v1000, %v1002
        %1107 = vadd.xlane.f32.xlu0 %v1106
        %v1108 = vpop.xlane.xlu0 %1107
        %v1109 = vadd.f32 %v1004, %v1006
        %1110 = vadd.xlane.f32.xlu0 %v1109
        %v1111 = vpop.xlane.xlu0 %1110
        %v1112 = vadd.f32 %v1008, %v1010
        %1113 = vadd.xlane.f32.xlu0 %v1112
        %v1114 = vpop.xlane.xlu0 %1113
        %v1115 = vadd.f32 %v1012, %v1014
        %1116 = vadd.xlane.f32.xlu0 %v1115
        %v1117 = vpop.xlane.xlu0 %1116
        %v1118 = vadd.f32 %v1016, %v1018
        %1119 = vadd.xlane.f32.xlu0 %v1118
        %v1120 = vpop.xlane.xlu0 %1119
        %v1121 = vadd.f32 %v1020, %v1022
        %1122 = vadd.xlane.f32.xlu0 %v1121
        %v1123 = vpop.xlane.xlu0 %1122
        %v1124 = vadd.f32 %v1024, %v1026
        %1125 = vadd.xlane.f32.xlu0 %v1124
        %v1126 = vpop.xlane.xlu0 %1125
        %v1127 = vadd.f32 %v1028, %v1030
        %1128 = vadd.xlane.f32.xlu0 %v1127
        %v1129 = vpop.xlane.xlu0 %1128
        %v1130 = vadd.f32 %v1032, %v1034
        %1131 = vadd.xlane.f32.xlu0 %v1130
        %v1132 = vpop.xlane.xlu0 %1131
        %v1133 = vadd.f32 %v1036, %v1038
        %1134 = vadd.xlane.f32.xlu0 %v1133
        %v1135 = vpop.xlane.xlu0 %1134
        %v1136 = vadd.f32 %v1040, %v1042
        %1137 = vadd.xlane.f32.xlu0 %v1136
        %v1138 = vpop.xlane.xlu0 %1137
        %v1139 = vpack.c.bf16 %v920, %v916
        %v1140 = vpack.c.bf16 %v922, %v918
        %v1141 = vpack.c.bf16 %v928, %v924
        %v1142 = vpack.c.bf16 %v930, %v926
        %v1143 = vpack.c.bf16 %v936, %v932
        %v1144 = vpack.c.bf16 %v938, %v934
        %v1145 = vpack.c.bf16 %v944, %v940
        %v1146 = vpack.c.bf16 %v946, %v942
        %v1147 = vpack.c.bf16 %v952, %v948
        %v1148 = vpack.c.bf16 %v954, %v950
        %v1149 = vpack.c.bf16 %v960, %v956
        %v1150 = vpack.c.bf16 %v962, %v958
        %v1151 = vpack.c.bf16 %v968, %v964
        %v1152 = vpack.c.bf16 %v970, %v966
        %v1153 = vpack.c.bf16 %v976, %v972
        %v1154 = vpack.c.bf16 %v978, %v974
        %v1155 = vpack.c.bf16 %v984, %v980
        %v1156 = vpack.c.bf16 %v986, %v982
        %v1157 = vpack.c.bf16 %v992, %v988
        %v1158 = vpack.c.bf16 %v994, %v990
        %v1159 = vpack.c.bf16 %v1000, %v996
        %v1160 = vpack.c.bf16 %v1002, %v998
        %v1161 = vpack.c.bf16 %v1008, %v1004
        %v1162 = vpack.c.bf16 %v1010, %v1006
        %v1163 = vpack.c.bf16 %v1016, %v1012
        %v1164 = vpack.c.bf16 %v1018, %v1014
        %v1165 = vpack.c.bf16 %v1024, %v1020
        %v1166 = vpack.c.bf16 %v1026, %v1022
        %v1167 = vpack.c.bf16 %v1032, %v1028
        %v1168 = vpack.c.bf16 %v1034, %v1030
        %v1169 = vpack.c.bf16 %v1040, %v1036
        %v1170 = vpack.c.bf16 %v1042, %v1038
        %1171 = vmatprep.subr.bf16.mxu0 %v480
        %1172 = vmatpush1.bf16.xpose.msra.mxu0 %v479
        %1173 = vmatprep.subr.bf16.mxu0 0
        %1174 = vmatpush1.bf16.xpose.msra.mxu0 0
        %1175 = vmatprep.subr.bf16.mxu0 0
        %1176 = vmatpush1.bf16.xpose.msra.mxu0 0
        %1177 = vmatprep.subr.bf16.mxu0 0
        %1178 = vmatpush1.bf16.xpose.msra.mxu0 0
        %1179 = vmatprep.subr.bf16.mxu0 0
        %1180 = vmatpush1.bf16.xpose.msra.mxu0 0
        %1181 = vmatprep.subr.bf16.mxu0 0
        %1182 = vmatpush1.bf16.xpose.msra.mxu0 0
        %1183 = vmatprep.subr.bf16.mxu0 0
        %1184 = vmatpush1.bf16.xpose.msra.mxu0 0
        %1185 = vmatprep.subr.bf16.mxu0 0
        %1186 = vmatpush1.bf16.xpose.msra.mxu0 0
        %1187 = vmatprep.subr.bf16.mxu0 0
        %1188 = vmatpush1.bf16.xpose.msra.mxu0 0
        %1189 = vmatprep.subr.bf16.mxu0 0
        %1190 = vmatpush1.bf16.xpose.msra.mxu0 0
        %1191 = vmatprep.subr.bf16.mxu0 0
        %1192 = vmatpush1.bf16.xpose.msra.mxu0 0
        %1193 = vmatprep.subr.bf16.mxu0 0
        %1194 = vmatpush1.bf16.xpose.msra.mxu0 0
        %1195 = vmatprep.subr.bf16.mxu0 0
        %1196 = vmatpush1.bf16.xpose.msra.mxu0 0
        %1197 = vmatprep.subr.bf16.mxu0 0
        %1198 = vmatpush1.bf16.xpose.msra.mxu0 0
        %1199 = vmatprep.subr.bf16.mxu0 0
        %1200 = vmatpush1.bf16.xpose.msra.mxu0 0
        %1201 = vmatprep.subr.bf16.mxu0 0
        %1202 = vmatpush1.bf16.xpose.msra.mxu0 0
        %1203 = vmatprep.mubr.bf16.mxu0 %v1140
        %1204 = vmatmul.mubr.bf16.gmra.mrb[0].mxu0 %v1139
        %v1205 = vpop.f32.mrb[0].mxu0
        %v1206 = vadd.f32 0.0, %v1205
        %v1207 = vpop.f32.mrb[0].mxu0
        %v1208 = vpop.f32.mrb[0].mxu0
        %v1209 = vadd.f32 0.0, %v1208
        %v1210 = vpop.f32.mrb[0].mxu0
        %1211 = vmatprep.mubr.bf16.mxu0 %v1142
        %1212 = vmatmul.mubr.bf16.gmra.mrb[0].mxu0 %v1141
        %v1213 = vpop.f32.mrb[0].mxu0
        %v1214 = vadd.f32 0.0, %v1213
        %v1215 = vpop.f32.mrb[0].mxu0
        %v1216 = vpop.f32.mrb[0].mxu0
        %v1217 = vadd.f32 0.0, %v1216
        %v1218 = vpop.f32.mrb[0].mxu0
        %1219 = vmatprep.mubr.bf16.mxu0 %v1144
        %1220 = vmatmul.mubr.bf16.gmra.mrb[0].mxu0 %v1143
        %v1221 = vpop.f32.mrb[0].mxu0
        %v1222 = vadd.f32 0.0, %v1221
        %v1223 = vpop.f32.mrb[0].mxu0
        %v1224 = vpop.f32.mrb[0].mxu0
        %v1225 = vadd.f32 0.0, %v1224
        %v1226 = vpop.f32.mrb[0].mxu0
        %1227 = vmatprep.mubr.bf16.mxu0 %v1146
        %1228 = vmatmul.mubr.bf16.gmra.mrb[0].mxu0 %v1145
        %v1229 = vpop.f32.mrb[0].mxu0
        %v1230 = vadd.f32 0.0, %v1229
        %v1231 = vpop.f32.mrb[0].mxu0
        %v1232 = vpop.f32.mrb[0].mxu0
        %v1233 = vadd.f32 0.0, %v1232
        %v1234 = vpop.f32.mrb[0].mxu0
        %1235 = vmatprep.mubr.bf16.mxu0 %v1148
        %1236 = vmatmul.mubr.bf16.gmra.mrb[0].mxu0 %v1147
        %v1237 = vpop.f32.mrb[0].mxu0
        %v1238 = vadd.f32 0.0, %v1237
        %v1239 = vpop.f32.mrb[0].mxu0
        %v1240 = vpop.f32.mrb[0].mxu0
        %v1241 = vadd.f32 0.0, %v1240
        %v1242 = vpop.f32.mrb[0].mxu0
        %1243 = vmatprep.mubr.bf16.mxu0 %v1150
        %1244 = vmatmul.mubr.bf16.gmra.mrb[0].mxu0 %v1149
        %v1245 = vpop.f32.mrb[0].mxu0
        %v1246 = vadd.f32 0.0, %v1245
        %v1247 = vpop.f32.mrb[0].mxu0
        %v1248 = vpop.f32.mrb[0].mxu0
        %v1249 = vadd.f32 0.0, %v1248
        %v1250 = vpop.f32.mrb[0].mxu0
        %1251 = vmatprep.mubr.bf16.mxu0 %v1152
        %1252 = vmatmul.mubr.bf16.gmra.mrb[0].mxu0 %v1151
        %v1253 = vpop.f32.mrb[0].mxu0
        %v1254 = vadd.f32 0.0, %v1253
        %v1255 = vpop.f32.mrb[0].mxu0
        %v1256 = vpop.f32.mrb[0].mxu0
        %v1257 = vadd.f32 0.0, %v1256
        %v1258 = vpop.f32.mrb[0].mxu0
        %1259 = vmatprep.mubr.bf16.mxu0 %v1154
        %1260 = vmatmul.mubr.bf16.gmra.mrb[0].mxu0 %v1153
        %v1261 = vpop.f32.mrb[0].mxu0
        %v1262 = vadd.f32 0.0, %v1261
        %v1263 = vpop.f32.mrb[0].mxu0
        %v1264 = vpop.f32.mrb[0].mxu0
        %v1265 = vadd.f32 0.0, %v1264
        %v1266 = vpop.f32.mrb[0].mxu0
        %1267 = vmatprep.mubr.bf16.mxu0 %v1156
        %1268 = vmatmul.mubr.bf16.gmra.mrb[0].mxu0 %v1155
        %v1269 = vpop.f32.mrb[0].mxu0
        %v1270 = vadd.f32 0.0, %v1269
        %v1271 = vpop.f32.mrb[0].mxu0
        %v1272 = vpop.f32.mrb[0].mxu0
        %v1273 = vadd.f32 0.0, %v1272
        %v1274 = vpop.f32.mrb[0].mxu0
        %1275 = vmatprep.mubr.bf16.mxu0 %v1158
        %1276 = vmatmul.mubr.bf16.gmra.mrb[0].mxu0 %v1157
        %v1277 = vpop.f32.mrb[0].mxu0
        %v1278 = vadd.f32 0.0, %v1277
        %v1279 = vpop.f32.mrb[0].mxu0
        %v1280 = vpop.f32.mrb[0].mxu0
        %v1281 = vadd.f32 0.0, %v1280
        %v1282 = vpop.f32.mrb[0].mxu0
        %1283 = vmatprep.mubr.bf16.mxu0 %v1160
        %1284 = vmatmul.mubr.bf16.gmra.mrb[0].mxu0 %v1159
        %v1285 = vpop.f32.mrb[0].mxu0
        %v1286 = vadd.f32 0.0, %v1285
        %v1287 = vpop.f32.mrb[0].mxu0
        %v1288 = vpop.f32.mrb[0].mxu0
        %v1289 = vadd.f32 0.0, %v1288
        %v1290 = vpop.f32.mrb[0].mxu0
        %1291 = vmatprep.mubr.bf16.mxu0 %v1162
        %1292 = vmatmul.mubr.bf16.gmra.mrb[0].mxu0 %v1161
        %v1293 = vpop.f32.mrb[0].mxu0
        %v1294 = vadd.f32 0.0, %v1293
        %v1295 = vpop.f32.mrb[0].mxu0
        %v1296 = vpop.f32.mrb[0].mxu0
        %v1297 = vadd.f32 0.0, %v1296
        %v1298 = vpop.f32.mrb[0].mxu0
        %1299 = vmatprep.mubr.bf16.mxu0 %v1164
        %1300 = vmatmul.mubr.bf16.gmra.mrb[0].mxu0 %v1163
        %v1301 = vpop.f32.mrb[0].mxu0
        %v1302 = vadd.f32 0.0, %v1301
        %v1303 = vpop.f32.mrb[0].mxu0
        %v1304 = vpop.f32.mrb[0].mxu0
        %v1305 = vadd.f32 0.0, %v1304
        %v1306 = vpop.f32.mrb[0].mxu0
        %1307 = vmatprep.mubr.bf16.mxu0 %v1166
        %1308 = vmatmul.mubr.bf16.gmra.mrb[0].mxu0 %v1165
        %v1309 = vpop.f32.mrb[0].mxu0
        %v1310 = vadd.f32 0.0, %v1309
        %v1311 = vpop.f32.mrb[0].mxu0
        %v1312 = vpop.f32.mrb[0].mxu0
        %v1313 = vadd.f32 0.0, %v1312
        %v1314 = vpop.f32.mrb[0].mxu0
        %1315 = vmatprep.mubr.bf16.mxu0 %v1168
        %1316 = vmatmul.mubr.bf16.gmra.mrb[0].mxu0 %v1167
        %v1317 = vpop.f32.mrb[0].mxu0
        %v1318 = vadd.f32 0.0, %v1317
        %v1319 = vpop.f32.mrb[0].mxu0
        %v1320 = vpop.f32.mrb[0].mxu0
        %v1321 = vadd.f32 0.0, %v1320
        %v1322 = vpop.f32.mrb[0].mxu0
        %1323 = vmatprep.mubr.bf16.mxu0 %v1170
        %1324 = vmatmul.mubr.bf16.gmra.mrb[0].mxu0 %v1169
        %v1325 = vpop.f32.mrb[0].mxu0
        %v1326 = vadd.f32 0.0, %v1325
        %v1327 = vpop.f32.mrb[0].mxu0
        %v1328 = vpop.f32.mrb[0].mxu0
        %v1329 = vadd.f32 0.0, %v1328
        %v1330 = vpop.f32.mrb[0].mxu0
        %1331 = vdwg.mxu0
        %v1332 = vrcp.pop %v1045
        %v1333 = vrcp.pop %v1048
        %v1334 = vrcp.pop %v1051
        %v1335 = vrcp.pop %v1054
        %v1336 = vrcp.pop %v1057
        %v1337 = vrcp.pop %v1060
        %v1338 = vrcp.pop %v1063
        %v1339 = vrcp.pop %v1066
        %v1340 = vrcp.pop %v1069
        %v1341 = vrcp.pop %v1072
        %v1342 = vrcp.pop %v1075
        %v1343 = vrcp.pop %v1078
        %v1344 = vrcp.pop %v1081
        %v1345 = vrcp.pop %v1084
        %v1346 = vrcp.pop %v1087
        %v1347 = vrcp.pop %v1090
        %v1348 = vrcp.pop %v1093
        %v1349 = vrcp.pop %v1096
        %v1350 = vrcp.pop %v1099
        %v1351 = vrcp.pop %v1102
        %v1352 = vrcp.pop %v1105
        %v1353 = vrcp.pop %v1108
        %v1354 = vrcp.pop %v1111
        %v1355 = vrcp.pop %v1114
        %v1356 = vrcp.pop %v1117
        %v1357 = vrcp.pop %v1120
        %v1358 = vrcp.pop %v1123
        %v1359 = vrcp.pop %v1126
        %v1360 = vrcp.pop %v1129
        %v1361 = vrcp.pop %v1132
        %v1362 = vrcp.pop %v1135
        %v1363 = vrcp.pop %v1138
        %v1364 = vmul.f32 %v1206, %v1332
        %v1365 = vmul.f32 %v1209, %v1333
        %v1366 = vmul.f32 %v1214, %v1334
        %v1367 = vmul.f32 %v1217, %v1335
        %v1368 = vmul.f32 %v1222, %v1336
        %v1369 = vmul.f32 %v1225, %v1337
        %v1370 = vmul.f32 %v1230, %v1338
        %v1371 = vmul.f32 %v1233, %v1339
        %v1372 = vmul.f32 %v1238, %v1340
        %v1373 = vmul.f32 %v1241, %v1341
        %v1374 = vmul.f32 %v1246, %v1342
        %v1375 = vmul.f32 %v1249, %v1343
        %v1376 = vmul.f32 %v1254, %v1344
        %v1377 = vmul.f32 %v1257, %v1345
        %v1378 = vmul.f32 %v1262, %v1346
        %v1379 = vmul.f32 %v1265, %v1347
        %v1380 = vmul.f32 %v1270, %v1348
        %v1381 = vmul.f32 %v1273, %v1349
        %v1382 = vmul.f32 %v1278, %v1350
        %v1383 = vmul.f32 %v1281, %v1351
        %v1384 = vmul.f32 %v1286, %v1352
        %v1385 = vmul.f32 %v1289, %v1353
        %v1386 = vmul.f32 %v1294, %v1354
        %v1387 = vmul.f32 %v1297, %v1355
        %v1388 = vmul.f32 %v1302, %v1356
        %v1389 = vmul.f32 %v1305, %v1357
        %v1390 = vmul.f32 %v1310, %v1358
        %v1391 = vmul.f32 %v1313, %v1359
        %v1392 = vmul.f32 %v1318, %v1360
        %v1393 = vmul.f32 %v1321, %v1361
        %v1394 = vmul.f32 %v1326, %v1362
        %v1395 = vmul.f32 %v1329, %v1363
        %v1396 = vpack.c.bf16 %v1365, %v1364
        %v1397 = vpack.c.bf16 %v1367, %v1366
        %v1398 = vpack.c.bf16 %v1369, %v1368
        %v1399 = vpack.c.bf16 %v1371, %v1370
        %v1400 = vpack.c.bf16 %v1373, %v1372
        %v1401 = vpack.c.bf16 %v1375, %v1374
        %v1402 = vpack.c.bf16 %v1377, %v1376
        %v1403 = vpack.c.bf16 %v1379, %v1378
        %v1404 = vpack.c.bf16 %v1381, %v1380
        %v1405 = vpack.c.bf16 %v1383, %v1382
        %v1406 = vpack.c.bf16 %v1385, %v1384
        %v1407 = vpack.c.bf16 %v1387, %v1386
        %v1408 = vpack.c.bf16 %v1389, %v1388
        %v1409 = vpack.c.bf16 %v1391, %v1390
        %v1410 = vpack.c.bf16 %v1393, %v1392
        %v1411 = vpack.c.bf16 %v1395, %v1394
        %v1412 = vpack.c.bf16 %v431, %v427
        %v1413 = vpack.c.bf16 %v433, %v429
        %v1414 = vpack.c.bf16 %v451, %v447
        %v1415 = vpack.c.bf16 %v453, %v449
        %v1416 = vpack.c.bf16 %v471, %v467
        %v1417 = vpack.c.bf16 %v473, %v469
        %1418 = vxpose.xlu0.c.b16.start [1/8] %v1412, 128
        %1419 = vxpose.xlu0.c.b16.cont [2/8] 0, 128
        %1420 = vxpose.xlu0.c.b16.cont [3/8] 0, 128
        %1421 = vxpose.xlu0.c.b16.cont [4/8] 0, 128
        %1422 = vxpose.xlu0.c.b16.cont [5/8] 0, 128
        %1423 = vxpose.xlu0.c.b16.cont [6/8] 0, 128
        %1424 = vxpose.xlu0.c.b16.cont [7/8] 0, 128
        %1425 = vxpose.xlu0.c.b16.end [8/8] 0, 128
        %v1426 = vpop.trf.xlu0
        %v1427 = vpop.trf.xlu0
        %v1428 = vpop.trf.xlu0
        %v1429 = vpop.trf.xlu0
        %v1430 = vpop.trf.xlu0
        %v1431 = vpop.trf.xlu0
        %v1432 = vpop.trf.xlu0
        %v1433 = vpop.trf.xlu0
        %1434 = vxpose.xlu0.c.b16.start [1/8] %v1413, 128
        %1435 = vxpose.xlu0.c.b16.cont [2/8] 0, 128
        %1436 = vxpose.xlu0.c.b16.cont [3/8] 0, 128
        %1437 = vxpose.xlu0.c.b16.cont [4/8] 0, 128
        %1438 = vxpose.xlu0.c.b16.cont [5/8] 0, 128
        %1439 = vxpose.xlu0.c.b16.cont [6/8] 0, 128
        %1440 = vxpose.xlu0.c.b16.cont [7/8] 0, 128
        %1441 = vxpose.xlu0.c.b16.end [8/8] 0, 128
        %v1442 = vpop.trf.xlu0
        %v1443 = vpop.trf.xlu0
        %v1444 = vpop.trf.xlu0
        %v1445 = vpop.trf.xlu0
        %v1446 = vpop.trf.xlu0
        %v1447 = vpop.trf.xlu0
        %v1448 = vpop.trf.xlu0
        %v1449 = vpop.trf.xlu0
        %v1451 = vsel %vm513, %v1426, 0
        %v1454 = vsel %vm513, %v1427, 0
        %v1457 = vsel %vm513, %v1428, 0
        %v1460 = vsel %vm513, %v1429, 0
        %v1463 = vsel %vm513, %v1430, 0
        %v1466 = vsel %vm513, %v1431, 0
        %v1469 = vsel %vm513, %v1432, 0
        %v1472 = vsel %vm513, %v1433, 0
        %v1475 = vsel %vm513, %v1442, 0
        %v1478 = vsel %vm513, %v1443, 0
        %v1481 = vsel %vm513, %v1444, 0
        %v1484 = vsel %vm513, %v1445, 0
        %v1487 = vsel %vm513, %v1446, 0
        %v1490 = vsel %vm513, %v1447, 0
        %v1493 = vsel %vm513, %v1448, 0
        %v1496 = vsel %vm513, %v1449, 0
        %1498 = vmatprep.subr.bf16.mxu0 %v1415
        %1499 = vmatpush1.bf16.msra.mxu0 %v1414
        %1500 = vmatprep.subr.bf16.mxu0 0
        %1501 = vmatpush1.bf16.msra.mxu0 0
        %1502 = vmatprep.subr.bf16.mxu0 0
        %1503 = vmatpush1.bf16.msra.mxu0 0
        %1504 = vmatprep.subr.bf16.mxu0 0
        %1505 = vmatpush1.bf16.msra.mxu0 0
        %1506 = vmatprep.subr.bf16.mxu0 0
        %1507 = vmatpush1.bf16.msra.mxu0 0
        %1508 = vmatprep.subr.bf16.mxu0 0
        %1509 = vmatpush1.bf16.msra.mxu0 0
        %1510 = vmatprep.subr.bf16.mxu0 0
        %1511 = vmatpush1.bf16.msra.mxu0 0
        %1512 = vmatprep.subr.bf16.mxu0 0
        %1513 = vmatpush1.bf16.msra.mxu0 0
        %1514 = vmatprep.subr.bf16.mxu0 0
        %1515 = vmatpush1.bf16.msra.mxu0 0
        %1516 = vmatprep.subr.bf16.mxu0 0
        %1517 = vmatpush1.bf16.msra.mxu0 0
        %1518 = vmatprep.subr.bf16.mxu0 0
        %1519 = vmatpush1.bf16.msra.mxu0 0
        %1520 = vmatprep.subr.bf16.mxu0 0
        %1521 = vmatpush1.bf16.msra.mxu0 0
        %1522 = vmatprep.subr.bf16.mxu0 0
        %1523 = vmatpush1.bf16.msra.mxu0 0
        %1524 = vmatprep.subr.bf16.mxu0 0
        %1525 = vmatpush1.bf16.msra.mxu0 0
        %1526 = vmatprep.subr.bf16.mxu0 0
        %1527 = vmatpush1.bf16.msra.mxu0 0
        %1528 = vmatprep.subr.bf16.mxu0 0
        %1529 = vmatpush1.bf16.msra.mxu0 0
        %1530 = vmatprep.mubr.bf16.mxu0 0
        %1531 = vmatmul.mubr.bf16.gmra.mrb[0].mxu0 %v1451
        %v1532 = vpop.f32.mrb[0].mxu0
        %v1533 = vadd.f32 0.0, %v1532
        %v1534 = vpop.f32.mrb[0].mxu0
        %v1535 = vadd.f32 0.0, %v1534
        %v1536 = vpop.f32.mrb[0].mxu0
        %v1537 = vadd.f32 0.0, %v1536
        %v1538 = vpop.f32.mrb[0].mxu0
        %v1539 = vadd.f32 0.0, %v1538
        %1540 = vmatprep.mubr.bf16.mxu0 0
        %1541 = vmatmul.mubr.bf16.gmra.mrb[0].mxu0 %v1454
        %v1542 = vpop.f32.mrb[0].mxu0
        %v1543 = vadd.f32 0.0, %v1542
        %v1544 = vpop.f32.mrb[0].mxu0
        %v1545 = vadd.f32 0.0, %v1544
        %v1546 = vpop.f32.mrb[0].mxu0
        %v1547 = vadd.f32 0.0, %v1546
        %v1548 = vpop.f32.mrb[0].mxu0
        %v1549 = vadd.f32 0.0, %v1548
        %1550 = vmatprep.mubr.bf16.mxu0 0
        %1551 = vmatmul.mubr.bf16.gmra.mrb[0].mxu0 %v1457
        %v1552 = vpop.f32.mrb[0].mxu0
        %v1553 = vadd.f32 0.0, %v1552
        %v1554 = vpop.f32.mrb[0].mxu0
        %v1555 = vadd.f32 0.0, %v1554
        %v1556 = vpop.f32.mrb[0].mxu0
        %v1557 = vadd.f32 0.0, %v1556
        %v1558 = vpop.f32.mrb[0].mxu0
        %v1559 = vadd.f32 0.0, %v1558
        %1560 = vmatprep.mubr.bf16.mxu0 0
        %1561 = vmatmul.mubr.bf16.gmra.mrb[0].mxu0 %v1460
        %v1562 = vpop.f32.mrb[0].mxu0
        %v1563 = vadd.f32 0.0, %v1562
        %v1564 = vpop.f32.mrb[0].mxu0
        %v1565 = vadd.f32 0.0, %v1564
        %v1566 = vpop.f32.mrb[0].mxu0
        %v1567 = vadd.f32 0.0, %v1566
        %v1568 = vpop.f32.mrb[0].mxu0
        %v1569 = vadd.f32 0.0, %v1568
        %1570 = vmatprep.mubr.bf16.mxu0 0
        %1571 = vmatmul.mubr.bf16.gmra.mrb[0].mxu0 %v1463
        %v1572 = vpop.f32.mrb[0].mxu0
        %v1573 = vadd.f32 0.0, %v1572
        %v1574 = vpop.f32.mrb[0].mxu0
        %v1575 = vadd.f32 0.0, %v1574
        %v1576 = vpop.f32.mrb[0].mxu0
        %v1577 = vadd.f32 0.0, %v1576
        %v1578 = vpop.f32.mrb[0].mxu0
        %v1579 = vadd.f32 0.0, %v1578
        %1580 = vmatprep.mubr.bf16.mxu0 0
        %1581 = vmatmul.mubr.bf16.gmra.mrb[0].mxu0 %v1466
        %v1582 = vpop.f32.mrb[0].mxu0
        %v1583 = vadd.f32 0.0, %v1582
        %v1584 = vpop.f32.mrb[0].mxu0
        %v1585 = vadd.f32 0.0, %v1584
        %v1586 = vpop.f32.mrb[0].mxu0
        %v1587 = vadd.f32 0.0, %v1586
        %v1588 = vpop.f32.mrb[0].mxu0
        %v1589 = vadd.f32 0.0, %v1588
        %1590 = vmatprep.mubr.bf16.mxu0 0
        %1591 = vmatmul.mubr.bf16.gmra.mrb[0].mxu0 %v1469
        %v1592 = vpop.f32.mrb[0].mxu0
        %v1593 = vadd.f32 0.0, %v1592
        %v1594 = vpop.f32.mrb[0].mxu0
        %v1595 = vadd.f32 0.0, %v1594
        %v1596 = vpop.f32.mrb[0].mxu0
        %v1597 = vadd.f32 0.0, %v1596
        %v1598 = vpop.f32.mrb[0].mxu0
        %v1599 = vadd.f32 0.0, %v1598
        %1600 = vmatprep.mubr.bf16.mxu0 0
        %1601 = vmatmul.mubr.bf16.gmra.mrb[0].mxu0 %v1472
        %v1602 = vpop.f32.mrb[0].mxu0
        %v1603 = vadd.f32 0.0, %v1602
        %v1604 = vpop.f32.mrb[0].mxu0
        %v1605 = vadd.f32 0.0, %v1604
        %v1606 = vpop.f32.mrb[0].mxu0
        %v1607 = vadd.f32 0.0, %v1606
        %v1608 = vpop.f32.mrb[0].mxu0
        %v1609 = vadd.f32 0.0, %v1608
        %1610 = vmatprep.mubr.bf16.mxu0 0
        %1611 = vmatmul.mubr.bf16.gmra.mrb[0].mxu0 %v1475
        %v1612 = vpop.f32.mrb[0].mxu0
        %v1613 = vadd.f32 0.0, %v1612
        %v1614 = vpop.f32.mrb[0].mxu0
        %v1615 = vadd.f32 0.0, %v1614
        %v1616 = vpop.f32.mrb[0].mxu0
        %v1617 = vadd.f32 0.0, %v1616
        %v1618 = vpop.f32.mrb[0].mxu0
        %v1619 = vadd.f32 0.0, %v1618
        %1620 = vmatprep.mubr.bf16.mxu0 0
        %1621 = vmatmul.mubr.bf16.gmra.mrb[0].mxu0 %v1478
        %v1622 = vpop.f32.mrb[0].mxu0
        %v1623 = vadd.f32 0.0, %v1622
        %v1624 = vpop.f32.mrb[0].mxu0
        %v1625 = vadd.f32 0.0, %v1624
        %v1626 = vpop.f32.mrb[0].mxu0
        %v1627 = vadd.f32 0.0, %v1626
        %v1628 = vpop.f32.mrb[0].mxu0
        %v1629 = vadd.f32 0.0, %v1628
        %1630 = vmatprep.mubr.bf16.mxu0 0
        %1631 = vmatmul.mubr.bf16.gmra.mrb[0].mxu0 %v1481
        %v1632 = vpop.f32.mrb[0].mxu0
        %v1633 = vadd.f32 0.0, %v1632
        %v1634 = vpop.f32.mrb[0].mxu0
        %v1635 = vadd.f32 0.0, %v1634
        %v1636 = vpop.f32.mrb[0].mxu0
        %v1637 = vadd.f32 0.0, %v1636
        %v1638 = vpop.f32.mrb[0].mxu0
        %v1639 = vadd.f32 0.0, %v1638
        %1640 = vmatprep.mubr.bf16.mxu0 0
        %1641 = vmatmul.mubr.bf16.gmra.mrb[0].mxu0 %v1484
        %v1642 = vpop.f32.mrb[0].mxu0
        %v1643 = vadd.f32 0.0, %v1642
        %v1644 = vpop.f32.mrb[0].mxu0
        %v1645 = vadd.f32 0.0, %v1644
        %v1646 = vpop.f32.mrb[0].mxu0
        %v1647 = vadd.f32 0.0, %v1646
        %v1648 = vpop.f32.mrb[0].mxu0
        %v1649 = vadd.f32 0.0, %v1648
        %1650 = vmatprep.mubr.bf16.mxu0 0
        %1651 = vmatmul.mubr.bf16.gmra.mrb[0].mxu0 %v1487
        %v1652 = vpop.f32.mrb[0].mxu0
        %v1653 = vadd.f32 0.0, %v1652
        %v1654 = vpop.f32.mrb[0].mxu0
        %v1655 = vadd.f32 0.0, %v1654
        %v1656 = vpop.f32.mrb[0].mxu0
        %v1657 = vadd.f32 0.0, %v1656
        %v1658 = vpop.f32.mrb[0].mxu0
        %v1659 = vadd.f32 0.0, %v1658
        %1660 = vmatprep.mubr.bf16.mxu0 0
        %1661 = vmatmul.mubr.bf16.gmra.mrb[0].mxu0 %v1490
        %v1662 = vpop.f32.mrb[0].mxu0
        %v1663 = vadd.f32 0.0, %v1662
        %v1664 = vpop.f32.mrb[0].mxu0
        %v1665 = vadd.f32 0.0, %v1664
        %v1666 = vpop.f32.mrb[0].mxu0
        %v1667 = vadd.f32 0.0, %v1666
        %v1668 = vpop.f32.mrb[0].mxu0
        %v1669 = vadd.f32 0.0, %v1668
        %1670 = vmatprep.mubr.bf16.mxu0 0
        %1671 = vmatmul.mubr.bf16.gmra.mrb[0].mxu0 %v1493
        %v1672 = vpop.f32.mrb[0].mxu0
        %v1673 = vadd.f32 0.0, %v1672
        %v1674 = vpop.f32.mrb[0].mxu0
        %v1675 = vadd.f32 0.0, %v1674
        %v1676 = vpop.f32.mrb[0].mxu0
        %v1677 = vadd.f32 0.0, %v1676
        %v1678 = vpop.f32.mrb[0].mxu0
        %v1679 = vadd.f32 0.0, %v1678
        %1680 = vmatprep.mubr.bf16.mxu0 0
        %1681 = vmatmul.mubr.bf16.gmra.mrb[0].mxu0 %v1496
        %v1682 = vpop.f32.mrb[0].mxu0
        %v1683 = vadd.f32 0.0, %v1682
        %v1684 = vpop.f32.mrb[0].mxu0
        %v1685 = vadd.f32 0.0, %v1684
        %v1686 = vpop.f32.mrb[0].mxu0
        %v1687 = vadd.f32 0.0, %v1686
        %v1688 = vpop.f32.mrb[0].mxu0
        %v1689 = vadd.f32 0.0, %v1688
        %1690 = vdwg.mxu0
        %v1691 = vmax.f32 %v1533, %v1535
        %1692 = vmax.xlane.f32.xlu0 %v1691
        %v1693 = vpop.xlane.xlu0 %1692
        %v1694 = vmax.f32 %v1537, %v1539
        %1695 = vmax.xlane.f32.xlu0 %v1694
        %v1696 = vpop.xlane.xlu0 %1695
        %v1697 = vmax.f32 %v1543, %v1545
        %1698 = vmax.xlane.f32.xlu0 %v1697
        %v1699 = vpop.xlane.xlu0 %1698
        %v1700 = vmax.f32 %v1547, %v1549
        %1701 = vmax.xlane.f32.xlu0 %v1700
        %v1702 = vpop.xlane.xlu0 %1701
        %v1703 = vmax.f32 %v1553, %v1555
        %1704 = vmax.xlane.f32.xlu0 %v1703
        %v1705 = vpop.xlane.xlu0 %1704
        %v1706 = vmax.f32 %v1557, %v1559
        %1707 = vmax.xlane.f32.xlu0 %v1706
        %v1708 = vpop.xlane.xlu0 %1707
        %v1709 = vmax.f32 %v1563, %v1565
        %1710 = vmax.xlane.f32.xlu0 %v1709
        %v1711 = vpop.xlane.xlu0 %1710
        %v1712 = vmax.f32 %v1567, %v1569
        %1713 = vmax.xlane.f32.xlu0 %v1712
        %v1714 = vpop.xlane.xlu0 %1713
        %v1715 = vmax.f32 %v1573, %v1575
        %1716 = vmax.xlane.f32.xlu0 %v1715
        %v1717 = vpop.xlane.xlu0 %1716
        %v1718 = vmax.f32 %v1577, %v1579
        %1719 = vmax.xlane.f32.xlu0 %v1718
        %v1720 = vpop.xlane.xlu0 %1719
        %v1721 = vmax.f32 %v1583, %v1585
        %1722 = vmax.xlane.f32.xlu0 %v1721
        %v1723 = vpop.xlane.xlu0 %1722
        %v1724 = vmax.f32 %v1587, %v1589
        %1725 = vmax.xlane.f32.xlu0 %v1724
        %v1726 = vpop.xlane.xlu0 %1725
        %v1727 = vmax.f32 %v1593, %v1595
        %1728 = vmax.xlane.f32.xlu0 %v1727
        %v1729 = vpop.xlane.xlu0 %1728
        %v1730 = vmax.f32 %v1597, %v1599
        %1731 = vmax.xlane.f32.xlu0 %v1730
        %v1732 = vpop.xlane.xlu0 %1731
        %v1733 = vmax.f32 %v1603, %v1605
        %1734 = vmax.xlane.f32.xlu0 %v1733
        %v1735 = vpop.xlane.xlu0 %1734
        %v1736 = vmax.f32 %v1607, %v1609
        %1737 = vmax.xlane.f32.xlu0 %v1736
        %v1738 = vpop.xlane.xlu0 %1737
        %v1739 = vmax.f32 %v1613, %v1615
        %1740 = vmax.xlane.f32.xlu0 %v1739
        %v1741 = vpop.xlane.xlu0 %1740
        %v1742 = vmax.f32 %v1617, %v1619
        %1743 = vmax.xlane.f32.xlu0 %v1742
        %v1744 = vpop.xlane.xlu0 %1743
        %v1745 = vmax.f32 %v1623, %v1625
        %1746 = vmax.xlane.f32.xlu0 %v1745
        %v1747 = vpop.xlane.xlu0 %1746
        %v1748 = vmax.f32 %v1627, %v1629
        %1749 = vmax.xlane.f32.xlu0 %v1748
        %v1750 = vpop.xlane.xlu0 %1749
        %v1751 = vmax.f32 %v1633, %v1635
        %1752 = vmax.xlane.f32.xlu0 %v1751
        %v1753 = vpop.xlane.xlu0 %1752
        %v1754 = vmax.f32 %v1637, %v1639
        %1755 = vmax.xlane.f32.xlu0 %v1754
        %v1756 = vpop.xlane.xlu0 %1755
        %v1757 = vmax.f32 %v1643, %v1645
        %1758 = vmax.xlane.f32.xlu0 %v1757
        %v1759 = vpop.xlane.xlu0 %1758
        %v1760 = vmax.f32 %v1647, %v1649
        %1761 = vmax.xlane.f32.xlu0 %v1760
        %v1762 = vpop.xlane.xlu0 %1761
        %v1763 = vmax.f32 %v1653, %v1655
        %1764 = vmax.xlane.f32.xlu0 %v1763
        %v1765 = vpop.xlane.xlu0 %1764
        %v1766 = vmax.f32 %v1657, %v1659
        %1767 = vmax.xlane.f32.xlu0 %v1766
        %v1768 = vpop.xlane.xlu0 %1767
        %v1769 = vmax.f32 %v1663, %v1665
        %1770 = vmax.xlane.f32.xlu0 %v1769
        %v1771 = vpop.xlane.xlu0 %1770
        %v1772 = vmax.f32 %v1667, %v1669
        %1773 = vmax.xlane.f32.xlu0 %v1772
        %v1774 = vpop.xlane.xlu0 %1773
        %v1775 = vmax.f32 %v1673, %v1675
        %1776 = vmax.xlane.f32.xlu0 %v1775
        %v1777 = vpop.xlane.xlu0 %1776
        %v1778 = vmax.f32 %v1677, %v1679
        %1779 = vmax.xlane.f32.xlu0 %v1778
        %v1780 = vpop.xlane.xlu0 %1779
        %v1781 = vmax.f32 %v1683, %v1685
        %1782 = vmax.xlane.f32.xlu0 %v1781
        %v1783 = vpop.xlane.xlu0 %1782
        %v1784 = vmax.f32 %v1687, %v1689
        %1785 = vmax.xlane.f32.xlu0 %v1784
        %v1786 = vpop.xlane.xlu0 %1785
        %v1787 = vsub.f32 %v1533, %v1693
        %v1788 = vsub.f32 %v1535, %v1693
        %v1789 = vsub.f32 %v1537, %v1696
        %v1790 = vsub.f32 %v1539, %v1696
        %v1791 = vsub.f32 %v1543, %v1699
        %v1792 = vsub.f32 %v1545, %v1699
        %v1793 = vsub.f32 %v1547, %v1702
        %v1794 = vsub.f32 %v1549, %v1702
        %v1795 = vsub.f32 %v1553, %v1705
        %v1796 = vsub.f32 %v1555, %v1705
        %v1797 = vsub.f32 %v1557, %v1708
        %v1798 = vsub.f32 %v1559, %v1708
        %v1799 = vsub.f32 %v1563, %v1711
        %v1800 = vsub.f32 %v1565, %v1711
        %v1801 = vsub.f32 %v1567, %v1714
        %v1802 = vsub.f32 %v1569, %v1714
        %v1803 = vsub.f32 %v1573, %v1717
        %v1804 = vsub.f32 %v1575, %v1717
        %v1805 = vsub.f32 %v1577, %v1720
        %v1806 = vsub.f32 %v1579, %v1720
        %v1807 = vsub.f32 %v1583, %v1723
        %v1808 = vsub.f32 %v1585, %v1723
        %v1809 = vsub.f32 %v1587, %v1726
        %v1810 = vsub.f32 %v1589, %v1726
        %v1811 = vsub.f32 %v1593, %v1729
        %v1812 = vsub.f32 %v1595, %v1729
        %v1813 = vsub.f32 %v1597, %v1732
        %v1814 = vsub.f32 %v1599, %v1732
        %v1815 = vsub.f32 %v1603, %v1735
        %v1816 = vsub.f32 %v1605, %v1735
        %v1817 = vsub.f32 %v1607, %v1738
        %v1818 = vsub.f32 %v1609, %v1738
        %v1819 = vsub.f32 %v1613, %v1741
        %v1820 = vsub.f32 %v1615, %v1741
        %v1821 = vsub.f32 %v1617, %v1744
        %v1822 = vsub.f32 %v1619, %v1744
        %v1823 = vsub.f32 %v1623, %v1747
        %v1824 = vsub.f32 %v1625, %v1747
        %v1825 = vsub.f32 %v1627, %v1750
        %v1826 = vsub.f32 %v1629, %v1750
        %v1827 = vsub.f32 %v1633, %v1753
        %v1828 = vsub.f32 %v1635, %v1753
        %v1829 = vsub.f32 %v1637, %v1756
        %v1830 = vsub.f32 %v1639, %v1756
        %v1831 = vsub.f32 %v1643, %v1759
        %v1832 = vsub.f32 %v1645, %v1759
        %v1833 = vsub.f32 %v1647, %v1762
        %v1834 = vsub.f32 %v1649, %v1762
        %v1835 = vsub.f32 %v1653, %v1765
        %v1836 = vsub.f32 %v1655, %v1765
        %v1837 = vsub.f32 %v1657, %v1768
        %v1838 = vsub.f32 %v1659, %v1768
        %v1839 = vsub.f32 %v1663, %v1771
        %v1840 = vsub.f32 %v1665, %v1771
        %v1841 = vsub.f32 %v1667, %v1774
        %v1842 = vsub.f32 %v1669, %v1774
        %v1843 = vsub.f32 %v1673, %v1777
        %v1844 = vsub.f32 %v1675, %v1777
        %v1845 = vsub.f32 %v1677, %v1780
        %v1846 = vsub.f32 %v1679, %v1780
        %v1847 = vsub.f32 %v1683, %v1783
        %v1848 = vsub.f32 %v1685, %v1783
        %v1849 = vsub.f32 %v1687, %v1786
        %v1850 = vsub.f32 %v1689, %v1786
        %v1851 = vmul.f32 %v1787, 1.442695
        %v1852 = vpow.pop %v1851
        %v1853 = vmul.f32 %v1788, 1.442695
        %v1854 = vpow.pop %v1853
        %v1855 = vmul.f32 %v1789, 1.442695
        %v1856 = vpow.pop %v1855
        %v1857 = vmul.f32 %v1790, 1.442695
        %v1858 = vpow.pop %v1857
        %v1859 = vmul.f32 %v1791, 1.442695
        %v1860 = vpow.pop %v1859
        %v1861 = vmul.f32 %v1792, 1.442695
        %v1862 = vpow.pop %v1861
        %v1863 = vmul.f32 %v1793, 1.442695
        %v1864 = vpow.pop %v1863
        %v1865 = vmul.f32 %v1794, 1.442695
        %v1866 = vpow.pop %v1865
        %v1867 = vmul.f32 %v1795, 1.442695
        %v1868 = vpow.pop %v1867
        %v1869 = vmul.f32 %v1796, 1.442695
        %v1870 = vpow.pop %v1869
        %v1871 = vmul.f32 %v1797, 1.442695
        %v1872 = vpow.pop %v1871
        %v1873 = vmul.f32 %v1798, 1.442695
        %v1874 = vpow.pop %v1873
        %v1875 = vmul.f32 %v1799, 1.442695
        %v1876 = vpow.pop %v1875
        %v1877 = vmul.f32 %v1800, 1.442695
        %v1878 = vpow.pop %v1877
        %v1879 = vmul.f32 %v1801, 1.442695
        %v1880 = vpow.pop %v1879
        %v1881 = vmul.f32 %v1802, 1.442695
        %v1882 = vpow.pop %v1881
        %v1883 = vmul.f32 %v1803, 1.442695
        %v1884 = vpow.pop %v1883
        %v1885 = vmul.f32 %v1804, 1.442695
        %v1886 = vpow.pop %v1885
        %v1887 = vmul.f32 %v1805, 1.442695
        %v1888 = vpow.pop %v1887
        %v1889 = vmul.f32 %v1806, 1.442695
        %v1890 = vpow.pop %v1889
        %v1891 = vmul.f32 %v1807, 1.442695
        %v1892 = vpow.pop %v1891
        %v1893 = vmul.f32 %v1808, 1.442695
        %v1894 = vpow.pop %v1893
        %v1895 = vmul.f32 %v1809, 1.442695
        %v1896 = vpow.pop %v1895
        %v1897 = vmul.f32 %v1810, 1.442695
        %v1898 = vpow.pop %v1897
        %v1899 = vmul.f32 %v1811, 1.442695
        %v1900 = vpow.pop %v1899
        %v1901 = vmul.f32 %v1812, 1.442695
        %v1902 = vpow.pop %v1901
        %v1903 = vmul.f32 %v1813, 1.442695
        %v1904 = vpow.pop %v1903
        %v1905 = vmul.f32 %v1814, 1.442695
        %v1906 = vpow.pop %v1905
        %v1907 = vmul.f32 %v1815, 1.442695
        %v1908 = vpow.pop %v1907
        %v1909 = vmul.f32 %v1816, 1.442695
        %v1910 = vpow.pop %v1909
        %v1911 = vmul.f32 %v1817, 1.442695
        %v1912 = vpow.pop %v1911
        %v1913 = vmul.f32 %v1818, 1.442695
        %v1914 = vpow.pop %v1913
        %v1915 = vmul.f32 %v1819, 1.442695
        %v1916 = vpow.pop %v1915
        %v1917 = vmul.f32 %v1820, 1.442695
        %v1918 = vpow.pop %v1917
        %v1919 = vmul.f32 %v1821, 1.442695
        %v1920 = vpow.pop %v1919
        %v1921 = vmul.f32 %v1822, 1.442695
        %v1922 = vpow.pop %v1921
        %v1923 = vmul.f32 %v1823, 1.442695
        %v1924 = vpow.pop %v1923
        %v1925 = vmul.f32 %v1824, 1.442695
        %v1926 = vpow.pop %v1925
        %v1927 = vmul.f32 %v1825, 1.442695
        %v1928 = vpow.pop %v1927
        %v1929 = vmul.f32 %v1826, 1.442695
        %v1930 = vpow.pop %v1929
        %v1931 = vmul.f32 %v1827, 1.442695
        %v1932 = vpow.pop %v1931
        %v1933 = vmul.f32 %v1828, 1.442695
        %v1934 = vpow.pop %v1933
        %v1935 = vmul.f32 %v1829, 1.442695
        %v1936 = vpow.pop %v1935
        %v1937 = vmul.f32 %v1830, 1.442695
        %v1938 = vpow.pop %v1937
        %v1939 = vmul.f32 %v1831, 1.442695
        %v1940 = vpow.pop %v1939
        %v1941 = vmul.f32 %v1832, 1.442695
        %v1942 = vpow.pop %v1941
        %v1943 = vmul.f32 %v1833, 1.442695
        %v1944 = vpow.pop %v1943
        %v1945 = vmul.f32 %v1834, 1.442695
        %v1946 = vpow.pop %v1945
        %v1947 = vmul.f32 %v1835, 1.442695
        %v1948 = vpow.pop %v1947
        %v1949 = vmul.f32 %v1836, 1.442695
        %v1950 = vpow.pop %v1949
        %v1951 = vmul.f32 %v1837, 1.442695
        %v1952 = vpow.pop %v1951
        %v1953 = vmul.f32 %v1838, 1.442695
        %v1954 = vpow.pop %v1953
        %v1955 = vmul.f32 %v1839, 1.442695
        %v1956 = vpow.pop %v1955
        %v1957 = vmul.f32 %v1840, 1.442695
        %v1958 = vpow.pop %v1957
        %v1959 = vmul.f32 %v1841, 1.442695
        %v1960 = vpow.pop %v1959
        %v1961 = vmul.f32 %v1842, 1.442695
        %v1962 = vpow.pop %v1961
        %v1963 = vmul.f32 %v1843, 1.442695
        %v1964 = vpow.pop %v1963
        %v1965 = vmul.f32 %v1844, 1.442695
        %v1966 = vpow.pop %v1965
        %v1967 = vmul.f32 %v1845, 1.442695
        %v1968 = vpow.pop %v1967
        %v1969 = vmul.f32 %v1846, 1.442695
        %v1970 = vpow.pop %v1969
        %v1971 = vmul.f32 %v1847, 1.442695
        %v1972 = vpow.pop %v1971
        %v1973 = vmul.f32 %v1848, 1.442695
        %v1974 = vpow.pop %v1973
        %v1975 = vmul.f32 %v1849, 1.442695
        %v1976 = vpow.pop %v1975
        %v1977 = vmul.f32 %v1850, 1.442695
        %v1978 = vpow.pop %v1977
        %v1979 = vadd.f32 %v1852, %v1854
        %1980 = vadd.xlane.f32.xlu0 %v1979
        %v1981 = vpop.xlane.xlu0 %1980
        %v1982 = vadd.f32 %v1856, %v1858
        %1983 = vadd.xlane.f32.xlu0 %v1982
        %v1984 = vpop.xlane.xlu0 %1983
        %v1985 = vadd.f32 %v1860, %v1862
        %1986 = vadd.xlane.f32.xlu0 %v1985
        %v1987 = vpop.xlane.xlu0 %1986
        %v1988 = vadd.f32 %v1864, %v1866
        %1989 = vadd.xlane.f32.xlu0 %v1988
        %v1990 = vpop.xlane.xlu0 %1989
        %v1991 = vadd.f32 %v1868, %v1870
        %1992 = vadd.xlane.f32.xlu0 %v1991
        %v1993 = vpop.xlane.xlu0 %1992
        %v1994 = vadd.f32 %v1872, %v1874
        %1995 = vadd.xlane.f32.xlu0 %v1994
        %v1996 = vpop.xlane.xlu0 %1995
        %v1997 = vadd.f32 %v1876, %v1878
        %1998 = vadd.xlane.f32.xlu0 %v1997
        %v1999 = vpop.xlane.xlu0 %1998
        %v2000 = vadd.f32 %v1880, %v1882
        %2001 = vadd.xlane.f32.xlu0 %v2000
        %v2002 = vpop.xlane.xlu0 %2001
        %v2003 = vadd.f32 %v1884, %v1886
        %2004 = vadd.xlane.f32.xlu0 %v2003
        %v2005 = vpop.xlane.xlu0 %2004
        %v2006 = vadd.f32 %v1888, %v1890
        %2007 = vadd.xlane.f32.xlu0 %v2006
        %v2008 = vpop.xlane.xlu0 %2007
        %v2009 = vadd.f32 %v1892, %v1894
        %2010 = vadd.xlane.f32.xlu0 %v2009
        %v2011 = vpop.xlane.xlu0 %2010
        %v2012 = vadd.f32 %v1896, %v1898
        %2013 = vadd.xlane.f32.xlu0 %v2012
        %v2014 = vpop.xlane.xlu0 %2013
        %v2015 = vadd.f32 %v1900, %v1902
        %2016 = vadd.xlane.f32.xlu0 %v2015
        %v2017 = vpop.xlane.xlu0 %2016
        %v2018 = vadd.f32 %v1904, %v1906
        %2019 = vadd.xlane.f32.xlu0 %v2018
        %v2020 = vpop.xlane.xlu0 %2019
        %v2021 = vadd.f32 %v1908, %v1910
        %2022 = vadd.xlane.f32.xlu0 %v2021
        %v2023 = vpop.xlane.xlu0 %2022
        %v2024 = vadd.f32 %v1912, %v1914
        %2025 = vadd.xlane.f32.xlu0 %v2024
        %v2026 = vpop.xlane.xlu0 %2025
        %v2027 = vadd.f32 %v1916, %v1918
        %2028 = vadd.xlane.f32.xlu0 %v2027
        %v2029 = vpop.xlane.xlu0 %2028
        %v2030 = vadd.f32 %v1920, %v1922
        %2031 = vadd.xlane.f32.xlu0 %v2030
        %v2032 = vpop.xlane.xlu0 %2031
        %v2033 = vadd.f32 %v1924, %v1926
        %2034 = vadd.xlane.f32.xlu0 %v2033
        %v2035 = vpop.xlane.xlu0 %2034
        %v2036 = vadd.f32 %v1928, %v1930
        %2037 = vadd.xlane.f32.xlu0 %v2036
        %v2038 = vpop.xlane.xlu0 %2037
        %v2039 = vadd.f32 %v1932, %v1934
        %2040 = vadd.xlane.f32.xlu0 %v2039
        %v2041 = vpop.xlane.xlu0 %2040
        %v2042 = vadd.f32 %v1936, %v1938
        %2043 = vadd.xlane.f32.xlu0 %v2042
        %v2044 = vpop.xlane.xlu0 %2043
        %v2045 = vadd.f32 %v1940, %v1942
        %2046 = vadd.xlane.f32.xlu0 %v2045
        %v2047 = vpop.xlane.xlu0 %2046
        %v2048 = vadd.f32 %v1944, %v1946
        %2049 = vadd.xlane.f32.xlu0 %v2048
        %v2050 = vpop.xlane.xlu0 %2049
        %v2051 = vadd.f32 %v1948, %v1950
        %2052 = vadd.xlane.f32.xlu0 %v2051
        %v2053 = vpop.xlane.xlu0 %2052
        %v2054 = vadd.f32 %v1952, %v1954
        %2055 = vadd.xlane.f32.xlu0 %v2054
        %v2056 = vpop.xlane.xlu0 %2055
        %v2057 = vadd.f32 %v1956, %v1958
        %2058 = vadd.xlane.f32.xlu0 %v2057
        %v2059 = vpop.xlane.xlu0 %2058
        %v2060 = vadd.f32 %v1960, %v1962
        %2061 = vadd.xlane.f32.xlu0 %v2060
        %v2062 = vpop.xlane.xlu0 %2061
        %v2063 = vadd.f32 %v1964, %v1966
        %2064 = vadd.xlane.f32.xlu0 %v2063
        %v2065 = vpop.xlane.xlu0 %2064
        %v2066 = vadd.f32 %v1968, %v1970
        %2067 = vadd.xlane.f32.xlu0 %v2066
        %v2068 = vpop.xlane.xlu0 %2067
        %v2069 = vadd.f32 %v1972, %v1974
        %2070 = vadd.xlane.f32.xlu0 %v2069
        %v2071 = vpop.xlane.xlu0 %2070
        %v2072 = vadd.f32 %v1976, %v1978
        %2073 = vadd.xlane.f32.xlu0 %v2072
        %v2074 = vpop.xlane.xlu0 %2073
        %v2075 = vpack.c.bf16 %v1856, %v1852
        %v2076 = vpack.c.bf16 %v1858, %v1854
        %v2077 = vpack.c.bf16 %v1864, %v1860
        %v2078 = vpack.c.bf16 %v1866, %v1862
        %v2079 = vpack.c.bf16 %v1872, %v1868
        %v2080 = vpack.c.bf16 %v1874, %v1870
        %v2081 = vpack.c.bf16 %v1880, %v1876
        %v2082 = vpack.c.bf16 %v1882, %v1878
        %v2083 = vpack.c.bf16 %v1888, %v1884
        %v2084 = vpack.c.bf16 %v1890, %v1886
        %v2085 = vpack.c.bf16 %v1896, %v1892
        %v2086 = vpack.c.bf16 %v1898, %v1894
        %v2087 = vpack.c.bf16 %v1904, %v1900
        %v2088 = vpack.c.bf16 %v1906, %v1902
        %v2089 = vpack.c.bf16 %v1912, %v1908
        %v2090 = vpack.c.bf16 %v1914, %v1910
        %v2091 = vpack.c.bf16 %v1920, %v1916
        %v2092 = vpack.c.bf16 %v1922, %v1918
        %v2093 = vpack.c.bf16 %v1928, %v1924
        %v2094 = vpack.c.bf16 %v1930, %v1926
        %v2095 = vpack.c.bf16 %v1936, %v1932
        %v2096 = vpack.c.bf16 %v1938, %v1934
        %v2097 = vpack.c.bf16 %v1944, %v1940
        %v2098 = vpack.c.bf16 %v1946, %v1942
        %v2099 = vpack.c.bf16 %v1952, %v1948
        %v2100 = vpack.c.bf16 %v1954, %v1950
        %v2101 = vpack.c.bf16 %v1960, %v1956
        %v2102 = vpack.c.bf16 %v1962, %v1958
        %v2103 = vpack.c.bf16 %v1968, %v1964
        %v2104 = vpack.c.bf16 %v1970, %v1966
        %v2105 = vpack.c.bf16 %v1976, %v1972
        %v2106 = vpack.c.bf16 %v1978, %v1974
        %2107 = vmatprep.subr.bf16.mxu0 %v1417
        %2108 = vmatpush1.bf16.xpose.msra.mxu0 %v1416
        %2109 = vmatprep.subr.bf16.mxu0 0
        %2110 = vmatpush1.bf16.xpose.msra.mxu0 0
        %2111 = vmatprep.subr.bf16.mxu0 0
        %2112 = vmatpush1.bf16.xpose.msra.mxu0 0
        %2113 = vmatprep.subr.bf16.mxu0 0
        %2114 = vmatpush1.bf16.xpose.msra.mxu0 0
        %2115 = vmatprep.subr.bf16.mxu0 0
        %2116 = vmatpush1.bf16.xpose.msra.mxu0 0
        %2117 = vmatprep.subr.bf16.mxu0 0
        %2118 = vmatpush1.bf16.xpose.msra.mxu0 0
        %2119 = vmatprep.subr.bf16.mxu0 0
        %2120 = vmatpush1.bf16.xpose.msra.mxu0 0
        %2121 = vmatprep.subr.bf16.mxu0 0
        %2122 = vmatpush1.bf16.xpose.msra.mxu0 0
        %2123 = vmatprep.subr.bf16.mxu0 0
        %2124 = vmatpush1.bf16.xpose.msra.mxu0 0
        %2125 = vmatprep.subr.bf16.mxu0 0
        %2126 = vmatpush1.bf16.xpose.msra.mxu0 0
        %2127 = vmatprep.subr.bf16.mxu0 0
        %2128 = vmatpush1.bf16.xpose.msra.mxu0 0
        %2129 = vmatprep.subr.bf16.mxu0 0
        %2130 = vmatpush1.bf16.xpose.msra.mxu0 0
        %2131 = vmatprep.subr.bf16.mxu0 0
        %2132 = vmatpush1.bf16.xpose.msra.mxu0 0
        %2133 = vmatprep.subr.bf16.mxu0 0
        %2134 = vmatpush1.bf16.xpose.msra.mxu0 0
        %2135 = vmatprep.subr.bf16.mxu0 0
        %2136 = vmatpush1.bf16.xpose.msra.mxu0 0
        %2137 = vmatprep.subr.bf16.mxu0 0
        %2138 = vmatpush1.bf16.xpose.msra.mxu0 0
        %2139 = vmatprep.mubr.bf16.mxu0 %v2076
        %2140 = vmatmul.mubr.bf16.gmra.mrb[0].mxu0 %v2075
        %v2141 = vpop.f32.mrb[0].mxu0
        %v2142 = vadd.f32 0.0, %v2141
        %v2143 = vpop.f32.mrb[0].mxu0
        %v2144 = vpop.f32.mrb[0].mxu0
        %v2145 = vadd.f32 0.0, %v2144
        %v2146 = vpop.f32.mrb[0].mxu0
        %2147 = vmatprep.mubr.bf16.mxu0 %v2078
        %2148 = vmatmul.mubr.bf16.gmra.mrb[0].mxu0 %v2077
        %v2149 = vpop.f32.mrb[0].mxu0
        %v2150 = vadd.f32 0.0, %v2149
        %v2151 = vpop.f32.mrb[0].mxu0
        %v2152 = vpop.f32.mrb[0].mxu0
        %v2153 = vadd.f32 0.0, %v2152
        %v2154 = vpop.f32.mrb[0].mxu0
        %2155 = vmatprep.mubr.bf16.mxu0 %v2080
        %2156 = vmatmul.mubr.bf16.gmra.mrb[0].mxu0 %v2079
        %v2157 = vpop.f32.mrb[0].mxu0
        %v2158 = vadd.f32 0.0, %v2157
        %v2159 = vpop.f32.mrb[0].mxu0
        %v2160 = vpop.f32.mrb[0].mxu0
        %v2161 = vadd.f32 0.0, %v2160
        %v2162 = vpop.f32.mrb[0].mxu0
        %2163 = vmatprep.mubr.bf16.mxu0 %v2082
        %2164 = vmatmul.mubr.bf16.gmra.mrb[0].mxu0 %v2081
        %v2165 = vpop.f32.mrb[0].mxu0
        %v2166 = vadd.f32 0.0, %v2165
        %v2167 = vpop.f32.mrb[0].mxu0
        %v2168 = vpop.f32.mrb[0].mxu0
        %v2169 = vadd.f32 0.0, %v2168
        %v2170 = vpop.f32.mrb[0].mxu0
        %2171 = vmatprep.mubr.bf16.mxu0 %v2084
        %2172 = vmatmul.mubr.bf16.gmra.mrb[0].mxu0 %v2083
        %v2173 = vpop.f32.mrb[0].mxu0
        %v2174 = vadd.f32 0.0, %v2173
        %v2175 = vpop.f32.mrb[0].mxu0
        %v2176 = vpop.f32.mrb[0].mxu0
        %v2177 = vadd.f32 0.0, %v2176
        %v2178 = vpop.f32.mrb[0].mxu0
        %2179 = vmatprep.mubr.bf16.mxu0 %v2086
        %2180 = vmatmul.mubr.bf16.gmra.mrb[0].mxu0 %v2085
        %v2181 = vpop.f32.mrb[0].mxu0
        %v2182 = vadd.f32 0.0, %v2181
        %v2183 = vpop.f32.mrb[0].mxu0
        %v2184 = vpop.f32.mrb[0].mxu0
        %v2185 = vadd.f32 0.0, %v2184
        %v2186 = vpop.f32.mrb[0].mxu0
        %2187 = vmatprep.mubr.bf16.mxu0 %v2088
        %2188 = vmatmul.mubr.bf16.gmra.mrb[0].mxu0 %v2087
        %v2189 = vpop.f32.mrb[0].mxu0
        %v2190 = vadd.f32 0.0, %v2189
        %v2191 = vpop.f32.mrb[0].mxu0
        %v2192 = vpop.f32.mrb[0].mxu0
        %v2193 = vadd.f32 0.0, %v2192
        %v2194 = vpop.f32.mrb[0].mxu0
        %2195 = vmatprep.mubr.bf16.mxu0 %v2090
        %2196 = vmatmul.mubr.bf16.gmra.mrb[0].mxu0 %v2089
        %v2197 = vpop.f32.mrb[0].mxu0
        %v2198 = vadd.f32 0.0, %v2197
        %v2199 = vpop.f32.mrb[0].mxu0
        %v2200 = vpop.f32.mrb[0].mxu0
        %v2201 = vadd.f32 0.0, %v2200
        %v2202 = vpop.f32.mrb[0].mxu0
        %2203 = vmatprep.mubr.bf16.mxu0 %v2092
        %2204 = vmatmul.mubr.bf16.gmra.mrb[0].mxu0 %v2091
        %v2205 = vpop.f32.mrb[0].mxu0
        %v2206 = vadd.f32 0.0, %v2205
        %v2207 = vpop.f32.mrb[0].mxu0
        %v2208 = vpop.f32.mrb[0].mxu0
        %v2209 = vadd.f32 0.0, %v2208
        %v2210 = vpop.f32.mrb[0].mxu0
        %2211 = vmatprep.mubr.bf16.mxu0 %v2094
        %2212 = vmatmul.mubr.bf16.gmra.mrb[0].mxu0 %v2093
        %v2213 = vpop.f32.mrb[0].mxu0
        %v2214 = vadd.f32 0.0, %v2213
        %v2215 = vpop.f32.mrb[0].mxu0
        %v2216 = vpop.f32.mrb[0].mxu0
        %v2217 = vadd.f32 0.0, %v2216
        %v2218 = vpop.f32.mrb[0].mxu0
        %2219 = vmatprep.mubr.bf16.mxu0 %v2096
        %2220 = vmatmul.mubr.bf16.gmra.mrb[0].mxu0 %v2095
        %v2221 = vpop.f32.mrb[0].mxu0
        %v2222 = vadd.f32 0.0, %v2221
        %v2223 = vpop.f32.mrb[0].mxu0
        %v2224 = vpop.f32.mrb[0].mxu0
        %v2225 = vadd.f32 0.0, %v2224
        %v2226 = vpop.f32.mrb[0].mxu0
        %2227 = vmatprep.mubr.bf16.mxu0 %v2098
        %2228 = vmatmul.mubr.bf16.gmra.mrb[0].mxu0 %v2097
        %v2229 = vpop.f32.mrb[0].mxu0
        %v2230 = vadd.f32 0.0, %v2229
        %v2231 = vpop.f32.mrb[0].mxu0
        %v2232 = vpop.f32.mrb[0].mxu0
        %v2233 = vadd.f32 0.0, %v2232
        %v2234 = vpop.f32.mrb[0].mxu0
        %2235 = vmatprep.mubr.bf16.mxu0 %v2100
        %2236 = vmatmul.mubr.bf16.gmra.mrb[0].mxu0 %v2099
        %v2237 = vpop.f32.mrb[0].mxu0
        %v2238 = vadd.f32 0.0, %v2237
        %v2239 = vpop.f32.mrb[0].mxu0
        %v2240 = vpop.f32.mrb[0].mxu0
        %v2241 = vadd.f32 0.0, %v2240
        %v2242 = vpop.f32.mrb[0].mxu0
        %2243 = vmatprep.mubr.bf16.mxu0 %v2102
        %2244 = vmatmul.mubr.bf16.gmra.mrb[0].mxu0 %v2101
        %v2245 = vpop.f32.mrb[0].mxu0
        %v2246 = vadd.f32 0.0, %v2245
        %v2247 = vpop.f32.mrb[0].mxu0
        %v2248 = vpop.f32.mrb[0].mxu0
        %v2249 = vadd.f32 0.0, %v2248
        %v2250 = vpop.f32.mrb[0].mxu0
        %2251 = vmatprep.mubr.bf16.mxu0 %v2104
        %2252 = vmatmul.mubr.bf16.gmra.mrb[0].mxu0 %v2103
        %v2253 = vpop.f32.mrb[0].mxu0
        %v2254 = vadd.f32 0.0, %v2253
        %v2255 = vpop.f32.mrb[0].mxu0
        %v2256 = vpop.f32.mrb[0].mxu0
        %v2257 = vadd.f32 0.0, %v2256
        %v2258 = vpop.f32.mrb[0].mxu0
        %2259 = vmatprep.mubr.bf16.mxu0 %v2106
        %2260 = vmatmul.mubr.bf16.gmra.mrb[0].mxu0 %v2105
        %v2261 = vpop.f32.mrb[0].mxu0
        %v2262 = vadd.f32 0.0, %v2261
        %v2263 = vpop.f32.mrb[0].mxu0
        %v2264 = vpop.f32.mrb[0].mxu0
        %v2265 = vadd.f32 0.0, %v2264
        %v2266 = vpop.f32.mrb[0].mxu0
        %2267 = vdwg.mxu0
        %v2268 = vrcp.pop %v1981
        %v2269 = vrcp.pop %v1984
        %v2270 = vrcp.pop %v1987
        %v2271 = vrcp.pop %v1990
        %v2272 = vrcp.pop %v1993
        %v2273 = vrcp.pop %v1996
        %v2274 = vrcp.pop %v1999
        %v2275 = vrcp.pop %v2002
        %v2276 = vrcp.pop %v2005
        %v2277 = vrcp.pop %v2008
        %v2278 = vrcp.pop %v2011
        %v2279 = vrcp.pop %v2014
        %v2280 = vrcp.pop %v2017
        %v2281 = vrcp.pop %v2020
        %v2282 = vrcp.pop %v2023
        %v2283 = vrcp.pop %v2026
        %v2284 = vrcp.pop %v2029
        %v2285 = vrcp.pop %v2032
        %v2286 = vrcp.pop %v2035
        %v2287 = vrcp.pop %v2038
        %v2288 = vrcp.pop %v2041
        %v2289 = vrcp.pop %v2044
        %v2290 = vrcp.pop %v2047
        %v2291 = vrcp.pop %v2050
        %v2292 = vrcp.pop %v2053
        %v2293 = vrcp.pop %v2056
        %v2294 = vrcp.pop %v2059
        %v2295 = vrcp.pop %v2062
        %v2296 = vrcp.pop %v2065
        %v2297 = vrcp.pop %v2068
        %v2298 = vrcp.pop %v2071
        %v2299 = vrcp.pop %v2074
        %v2300 = vmul.f32 %v2142, %v2268
        %v2301 = vmul.f32 %v2145, %v2269
        %v2302 = vmul.f32 %v2150, %v2270
        %v2303 = vmul.f32 %v2153, %v2271
        %v2304 = vmul.f32 %v2158, %v2272
        %v2305 = vmul.f32 %v2161, %v2273
        %v2306 = vmul.f32 %v2166, %v2274
        %v2307 = vmul.f32 %v2169, %v2275
        %v2308 = vmul.f32 %v2174, %v2276
        %v2309 = vmul.f32 %v2177, %v2277
        %v2310 = vmul.f32 %v2182, %v2278
        %v2311 = vmul.f32 %v2185, %v2279
        %v2312 = vmul.f32 %v2190, %v2280
        %v2313 = vmul.f32 %v2193, %v2281
        %v2314 = vmul.f32 %v2198, %v2282
        %v2315 = vmul.f32 %v2201, %v2283
        %v2316 = vmul.f32 %v2206, %v2284
        %v2317 = vmul.f32 %v2209, %v2285
        %v2318 = vmul.f32 %v2214, %v2286
        %v2319 = vmul.f32 %v2217, %v2287
        %v2320 = vmul.f32 %v2222, %v2288
        %v2321 = vmul.f32 %v2225, %v2289
        %v2322 = vmul.f32 %v2230, %v2290
        %v2323 = vmul.f32 %v2233, %v2291
        %v2324 = vmul.f32 %v2238, %v2292
        %v2325 = vmul.f32 %v2241, %v2293
        %v2326 = vmul.f32 %v2246, %v2294
        %v2327 = vmul.f32 %v2249, %v2295
        %v2328 = vmul.f32 %v2254, %v2296
        %v2329 = vmul.f32 %v2257, %v2297
        %v2330 = vmul.f32 %v2262, %v2298
        %v2331 = vmul.f32 %v2265, %v2299
        %v2332 = vpack.c.bf16 %v2301, %v2300
        %v2333 = vpack.c.bf16 %v2303, %v2302
        %v2334 = vpack.c.bf16 %v2305, %v2304
        %v2335 = vpack.c.bf16 %v2307, %v2306
        %v2336 = vpack.c.bf16 %v2309, %v2308
        %v2337 = vpack.c.bf16 %v2311, %v2310
        %v2338 = vpack.c.bf16 %v2313, %v2312
        %v2339 = vpack.c.bf16 %v2315, %v2314
        %v2340 = vpack.c.bf16 %v2317, %v2316
        %v2341 = vpack.c.bf16 %v2319, %v2318
        %v2342 = vpack.c.bf16 %v2321, %v2320
        %v2343 = vpack.c.bf16 %v2323, %v2322
        %v2344 = vpack.c.bf16 %v2325, %v2324
        %v2345 = vpack.c.bf16 %v2327, %v2326
        %v2346 = vpack.c.bf16 %v2329, %v2328
        %v2347 = vpack.c.bf16 %v2331, %v2330
        %v2352 = vunpack.c.l.b16 %v257
        %v2353 = vunpack.c.l.b16 %v258
        %v2354 = vunpack.c.l.b16 %v259
        %v2355 = vunpack.c.l.b16 %v260
        %v2356 = vpack.c.b16 %v2353, %v2352
        %v2357 = vpack.c.b16 %v2355, %v2354
        %v2359 = vsel %vm513, %v2356, 0
        %v2362 = vsel %vm513, %v2357, 0
        %v2365 = vsel %vm513, %v2332, 0
        %v2368 = vsel %vm513, %v2333, 0
        %v2371 = vsel %vm513, %v2334, 0
        %v2374 = vsel %vm513, %v2335, 0
        %v2377 = vsel %vm513, %v2336, 0
        %v2380 = vsel %vm513, %v2337, 0
        %v2383 = vsel %vm513, %v2338, 0
        %v2386 = vsel %vm513, %v2339, 0
        %v2389 = vsel %vm513, %v2340, 0
        %v2392 = vsel %vm513, %v2341, 0
        %v2395 = vsel %vm513, %v2342, 0
        %v2398 = vsel %vm513, %v2343, 0
        %v2401 = vsel %vm513, %v2344, 0
        %v2404 = vsel %vm513, %v2345, 0
        %v2407 = vsel %vm513, %v2346, 0
        %v2410 = vsel %vm513, %v2347, 0
        %2412 = vmatprep.subr.bf16.mxu0 0
        %2413 = vmatpush1.bf16.xpose.msra.mxu0 %v2365
        %2414 = vmatprep.subr.bf16.mxu0 0
        %2415 = vmatpush1.bf16.xpose.msra.mxu0 %v2368
        %2416 = vmatprep.subr.bf16.mxu0 0
        %2417 = vmatpush1.bf16.xpose.msra.mxu0 %v2371
        %2418 = vmatprep.subr.bf16.mxu0 0
        %2419 = vmatpush1.bf16.xpose.msra.mxu0 %v2374
        %2420 = vmatprep.subr.bf16.mxu0 0
        %2421 = vmatpush1.bf16.xpose.msra.mxu0 %v2377
        %2422 = vmatprep.subr.bf16.mxu0 0
        %2423 = vmatpush1.bf16.xpose.msra.mxu0 %v2380
        %2424 = vmatprep.subr.bf16.mxu0 0
        %2425 = vmatpush1.bf16.xpose.msra.mxu0 %v2383
        %2426 = vmatprep.subr.bf16.mxu0 0
        %2427 = vmatpush1.bf16.xpose.msra.mxu0 %v2386
        %2428 = vmatprep.subr.bf16.mxu0 0
        %2429 = vmatpush1.bf16.xpose.msra.mxu0 %v2389
        %2430 = vmatprep.subr.bf16.mxu0 0
        %2431 = vmatpush1.bf16.xpose.msra.mxu0 %v2392
        %2432 = vmatprep.subr.bf16.mxu0 0
        %2433 = vmatpush1.bf16.xpose.msra.mxu0 %v2395
        %2434 = vmatprep.subr.bf16.mxu0 0
        %2435 = vmatpush1.bf16.xpose.msra.mxu0 %v2398
        %2436 = vmatprep.subr.bf16.mxu0 0
        %2437 = vmatpush1.bf16.xpose.msra.mxu0 %v2401
        %2438 = vmatprep.subr.bf16.mxu0 0
        %2439 = vmatpush1.bf16.xpose.msra.mxu0 %v2404
        %2440 = vmatprep.subr.bf16.mxu0 0
        %2441 = vmatpush1.bf16.xpose.msra.mxu0 %v2407
        %2442 = vmatprep.subr.bf16.mxu0 0
        %2443 = vmatpush1.bf16.xpose.msra.mxu0 %v2410
        %2444 = vmatprep.mubr.bf16.mxu0 0
        %2445 = vmatmul.mubr.bf16.gmra.mrb[0].mxu0 %v2359
        %v2446 = vpop.f32.mrb[0].mxu0
        %v2447 = vadd.f32 0.0, %v2446
        %v2448 = vpop.f32.mrb[0].mxu0
        %v2449 = vadd.f32 0.0, %v2448
        %v2450 = vpop.f32.mrb[0].mxu0
        %v2451 = vadd.f32 0.0, %v2450
        %v2452 = vpop.f32.mrb[0].mxu0
        %v2453 = vadd.f32 0.0, %v2452
        %2454 = vmatprep.mubr.bf16.mxu0 0
        %2455 = vmatmul.mubr.bf16.gmra.mrb[0].mxu0 %v2362
        %v2456 = vpop.f32.mrb[0].mxu0
        %v2457 = vadd.f32 0.0, %v2456
        %v2458 = vpop.f32.mrb[0].mxu0
        %v2459 = vadd.f32 0.0, %v2458
        %v2460 = vpop.f32.mrb[0].mxu0
        %v2461 = vadd.f32 0.0, %v2460
        %v2462 = vpop.f32.mrb[0].mxu0
        %v2463 = vadd.f32 0.0, %v2462
        %2464 = vdwg.mxu0
        %v2469 = vunpack.c.l.b16 %v252
        %v2470 = vunpack.c.l.b16 %v253
        %v2471 = vunpack.c.l.b16 %v254
        %v2472 = vunpack.c.l.b16 %v255
        %v2473 = vpack.c.b16 %v2470, %v2469
        %v2474 = vpack.c.b16 %v2472, %v2471
        %v2476 = vsel %vm513, %v2473, 0
        %v2479 = vsel %vm513, %v2474, 0
        %v2482 = vsel %vm513, %v1396, 0
        %v2485 = vsel %vm513, %v1397, 0
        %v2488 = vsel %vm513, %v1398, 0
        %v2491 = vsel %vm513, %v1399, 0
        %v2494 = vsel %vm513, %v1400, 0
        %v2497 = vsel %vm513, %v1401, 0
        %v2500 = vsel %vm513, %v1402, 0
        %v2503 = vsel %vm513, %v1403, 0
        %v2506 = vsel %vm513, %v1404, 0
        %v2509 = vsel %vm513, %v1405, 0
        %v2512 = vsel %vm513, %v1406, 0
        %v2515 = vsel %vm513, %v1407, 0
        %v2518 = vsel %vm513, %v1408, 0
        %v2521 = vsel %vm513, %v1409, 0
        %v2524 = vsel %vm513, %v1410, 0
        %v2527 = vsel %vm513, %v1411, 0
        %2529 = vmatprep.subr.bf16.mxu0 0
        %2530 = vmatpush1.bf16.xpose.msra.mxu0 %v2482
        %2531 = vmatprep.subr.bf16.mxu0 0
        %2532 = vmatpush1.bf16.xpose.msra.mxu0 %v2485
        %2533 = vmatprep.subr.bf16.mxu0 0
        %2534 = vmatpush1.bf16.xpose.msra.mxu0 %v2488
        %2535 = vmatprep.subr.bf16.mxu0 0
        %2536 = vmatpush1.bf16.xpose.msra.mxu0 %v2491
        %2537 = vmatprep.subr.bf16.mxu0 0
        %2538 = vmatpush1.bf16.xpose.msra.mxu0 %v2494
        %2539 = vmatprep.subr.bf16.mxu0 0
        %2540 = vmatpush1.bf16.xpose.msra.mxu0 %v2497
        %2541 = vmatprep.subr.bf16.mxu0 0
        %2542 = vmatpush1.bf16.xpose.msra.mxu0 %v2500
        %2543 = vmatprep.subr.bf16.mxu0 0
        %2544 = vmatpush1.bf16.xpose.msra.mxu0 %v2503
        %2545 = vmatprep.subr.bf16.mxu0 0
        %2546 = vmatpush1.bf16.xpose.msra.mxu0 %v2506
        %2547 = vmatprep.subr.bf16.mxu0 0
        %2548 = vmatpush1.bf16.xpose.msra.mxu0 %v2509
        %2549 = vmatprep.subr.bf16.mxu0 0
        %2550 = vmatpush1.bf16.xpose.msra.mxu0 %v2512
        %2551 = vmatprep.subr.bf16.mxu0 0
        %2552 = vmatpush1.bf16.xpose.msra.mxu0 %v2515
        %2553 = vmatprep.subr.bf16.mxu0 0
        %2554 = vmatpush1.bf16.xpose.msra.mxu0 %v2518
        %2555 = vmatprep.subr.bf16.mxu0 0
        %2556 = vmatpush1.bf16.xpose.msra.mxu0 %v2521
        %2557 = vmatprep.subr.bf16.mxu0 0
        %2558 = vmatpush1.bf16.xpose.msra.mxu0 %v2524
        %2559 = vmatprep.subr.bf16.mxu0 0
        %2560 = vmatpush1.bf16.xpose.msra.mxu0 %v2527
        %2561 = vmatprep.mubr.bf16.mxu0 0
        %2562 = vmatmul.mubr.bf16.gmra.mrb[0].mxu0 %v2476
        %v2563 = vpop.f32.mrb[0].mxu0
        %v2564 = vadd.f32 %v2447, %v2563
        %v2565 = vpop.f32.mrb[0].mxu0
        %v2566 = vadd.f32 %v2449, %v2565
        %v2567 = vpop.f32.mrb[0].mxu0
        %v2568 = vadd.f32 %v2451, %v2567
        %v2569 = vpop.f32.mrb[0].mxu0
        %v2570 = vadd.f32 %v2453, %v2569
        %2571 = vmatprep.mubr.bf16.mxu0 0
        %2572 = vmatmul.mubr.bf16.gmra.mrb[0].mxu0 %v2479
        %v2573 = vpop.f32.mrb[0].mxu0
        %v2574 = vadd.f32 %v2457, %v2573
        %v2575 = vpop.f32.mrb[0].mxu0
        %v2576 = vadd.f32 %v2459, %v2575
        %v2577 = vpop.f32.mrb[0].mxu0
        %v2578 = vadd.f32 %v2461, %v2577
        %v2579 = vpop.f32.mrb[0].mxu0
        %v2580 = vadd.f32 %v2463, %v2579
        %2581 = vdwg.mxu0
        %2583 = vset.pattern.permute.xlu0 0
        %2584 = vperm.xlu0 %2583, %v248
        %v2585 = vpop.permute.xlu0 %2584
        %2588 = vset.pattern.permute.xlu0 0
        %2589 = vperm.xlu0 %2588, %v249
        %v2590 = vpop.permute.xlu0 %2589
        %2593 = vset.pattern.permute.xlu0 0
        %2594 = vperm.xlu0 %2593, %v250
        %v2595 = vpop.permute.xlu0 %2594
        %2598 = vset.pattern.permute.xlu0 0
        %2599 = vperm.xlu0 %2598, %v251
        %v2600 = vpop.permute.xlu0 %2599
        %v2602 = vadd.f32 %v2564, %v2585
        %v2603 = vadd.f32 %v2566, %v2585
        %v2604 = vadd.f32 %v2568, %v2590
        %v2605 = vadd.f32 %v2570, %v2590
        %v2606 = vadd.f32 %v2574, %v2595
        %v2607 = vadd.f32 %v2576, %v2595
        %v2608 = vadd.f32 %v2578, %v2600
        %v2609 = vadd.f32 %v2580, %v2600
        %2610 = vst [vmem:[%s217] sm:$0xff] %v2602
        %2611 = vst [vmem:[%s217 + $0x8] sm:$0xff] %v2603
        %2612 = vst [vmem:[%s217 + $0x10] sm:$0xff] %v2604
        %2613 = vst [vmem:[%s217 + $0x18] sm:$0xff] %v2605
        %2614 = vst [vmem:[%s217 + $0x20] sm:$0xff] %v2606
        %2615 = vst [vmem:[%s217 + $0x28] sm:$0xff] %v2607
        %2616 = vst [vmem:[%s217 + $0x30] sm:$0xff] %v2608
        %2617 = vst [vmem:[%s217 + $0x38] sm:$0xff] %v2609
        %s2618 = sand.u32 %s137, 1
        %s2619 = scalar_lea.sflag [#allocation3], %s2618
        %s2620 = sand.u32 %s137, 1
        %s2621 = smul.addr %s2620, 64
        %s2622 = scalar_lea.vmem [#allocation2], %s2621
        // Predicated region
        $region41: #{tpu_custom_call.1} parent=39 // pred_check
          %p2623 = pneg %p147
        $region42: #{tpu_custom_call.1} parent=39 // pred_check_branch
          %2625 = sbr.rel (%p2623) target = $region44
        $region43: #{tpu_custom_call.1} parent=39 // pred_region
          %s2627 = ssub.s32 1024, 1024
          %2628 = vsyncadd %s2619, %s2627
          %s2629 = smul.addr %s19, 8
          %s2630 = smul.addr %s2629, 128
          %s2631 = scalar_lea.hbm %s5, %s2630
          %s2632 = sshll.u32 %s2622, 4
          %s2633 = int_to_ptr.vmem [resolvable:$true] %s2632
          %2638 = dma.vmem_to_hbm [thread:$0]  %s2633, 1024, %s2631, %s2619, 256, 256, 16
        $region44: #{tpu_custom_call.1} parent=39 // pred_fallthru
          _
      $region40: #{tpu_custom_call.1} parent=5 // pred_fallthru
        _
      %p2639 = scmp.le.s32.totalorder 2, %s14
      // Predicated region
      $region45: #{tpu_custom_call.1} parent=5 // pred_check
        %p2640 = pneg %p2639
      $region46: #{tpu_custom_call.1} parent=5 // pred_check_branch
        %2642 = sbr.rel (%p2640) target = $region48
      $region47: #{tpu_custom_call.1} parent=5 // pred_region
        %s2643 = ssub.s32 %s14, 2
        // Predicated region
        $region49: #{tpu_custom_call.1} parent=47 // pred_check
          %p2644 = pneg %p153
        $region50: #{tpu_custom_call.1} parent=47 // pred_check_branch
          %2646 = sbr.rel (%p2644) target = $region52
        $region51: #{tpu_custom_call.1} parent=47 // pred_region
          %s2647 = sand.u32 %s138, 1
          %s2648 = scalar_lea.sflag [#allocation3], %s2647
          %s2649 = sand.u32 %s138, 1
          %s2650 = smul.addr %s2649, 64
          %s2651 = scalar_lea.vmem [#allocation2], %s2650
          %2652 = dma.done %s2648, 1024
        $region52: #{tpu_custom_call.1} parent=47 // pred_fallthru
          _
      $region48: #{tpu_custom_call.1} parent=5 // pred_fallthru
        _
    $region6: #{tpu_custom_call.1} parent=1 // loop_footer
      %s18 = sadd.s32 1, %s14
    $region7: #{tpu_custom_call.1} parent=1 // loop_footer_branch
      %13 = sbr.rel target = $region3
    $region8: #{tpu_custom_call.1} parent=1 // loop_exit
      _
    %2653 = vsyncpa [#allocation3], 1
    %s2654 = scalar_lea.sflag [#allocation3], 1
    %2655 = vsyncpa %s2654, 1

</llo_original>
